<compile_context>
chip_gen: v6e
topology: v6e:2x2x1
jax: 0.10.0
libtpu: 0.0.40
codegen_flags: <defaults>
</compile_context>

<pallas_src>
import math

import jax
import jax.numpy as jnp
import numpy as np
from jax import lax
from jax.experimental import pallas as pl
from jax.experimental.pallas import tpu as pltpu

# Module hyper-parameters (from the PyTorch source)
N_EMBD = 384
BLOCK_SIZE = 256       # tril buffer size; we only need T <= BLOCK_SIZE
HEAD_SIZE = 64         # constructor arg; n_embd // 6 as in the full GPT model


def head_kernel(x_ref, wqkv_ref, o_ref):
    """Grid = (B // Bt,). One grid step = Bt full batch elements."""
    Bt, T, C = x_ref.shape
    hs = o_ref.shape[-1]

    # One fused full-depth projection for all Bt batch elements.
    # In-kernel f32 -> bf16 cast (VPU, hides under the MXU).
    x = x_ref[...].reshape(Bt * T, C).astype(jnp.bfloat16)        # (Bt*T, C)
    w = wqkv_ref[...]                                             # (C, 3*hs) bf16
    qkv = jnp.dot(x, w, preferred_element_type=jnp.float32)       # (Bt*T, 3*hs) f32

    # Causal mask built once per grid step (finite negative -> NaN-safe).
    row = lax.broadcasted_iota(jnp.int32, (T, T), 0)
    col = lax.broadcasted_iota(jnp.int32, (T, T), 1)
    causal = col <= row

    # Statically-unrolled per-batch attention (Bt is a trace-time constant).
    for b in range(Bt):
        qkv_b = qkv[b * T:(b + 1) * T]                            # (T, 3*hs)
        q = qkv_b[:, :hs].astype(jnp.bfloat16)   # scale already folded into Wq
        k = qkv_b[:, hs:2 * hs].astype(jnp.bfloat16)
        v = qkv_b[:, 2 * hs:].astype(jnp.bfloat16)

        # scores[i, j] = sum_d q[i, d] * k[j, d]  ('qd,kd->qk', no k transpose),
        # bf16 operands with f32 MXU accumulation.
        scores = lax.dot_general(q, k, (((1,), (1,)), ((), ())),
                                 preferred_element_type=jnp.float32)  # (T, T)
        scores = jnp.where(causal, scores, jnp.float32(-1e30))

        # Numerically-stable softmax; denom from f32 p, normalization after PV.
        p = jnp.exp(scores - jnp.max(scores, axis=-1, keepdims=True))  # f32
        denom = jnp.sum(p, axis=-1, keepdims=True)                     # (T, 1) f32
        out = jnp.dot(p.astype(jnp.bfloat16), v,
                      preferred_element_type=jnp.float32)              # (T, hs)
        out = out * pl.reciprocal(denom, approx=True)                  # EUP slot

        o_ref[b] = out.astype(o_ref.dtype)


def _pick_batch_block(B, T):
    """Largest Bt that (a) divides B, (b) keeps >= 2 grid steps when B >= 2
    (so both v7x TensorCores get work), and (c) keeps M = Bt*T <= 512."""
    for bt in (4, 2):
        if B % bt == 0 and B // bt >= 2 and bt * T <= 512:
            return bt
    return 1


def head_attention(x, wq, wk, wv, *, batch_block=None):
    """x: (B, T, C) f32.  wq/wk/wv: (head_size, C) — nn.Linear weight layout."""
    B, T, C = x.shape
    hs = wq.shape[0]
    assert wq.shape == wk.shape == wv.shape == (hs, C)
    assert C == N_EMBD and T <= BLOCK_SIZE
    assert T % 8 == 0, "sequence length must be sublane-aligned"

    if batch_block is None:
        batch_block = _pick_batch_block(B, T)
    assert B % batch_block == 0

    # Host-side weight prep: transpose to (C, hs), fold the attention scale
    # (1/8, exact in bf16) into Wq, fuse q/k/v into one (C, 3*hs) bf16 matrix.
    scale = 1.0 / math.sqrt(hs)
    wqkv = jnp.concatenate([wq.T * scale, wk.T, wv.T], axis=1)    # (C, 3*hs)
    wqkv_bf = wqkv.astype(jnp.bfloat16)

    return pl.pallas_call(
        head_kernel,
        out_shape=jax.ShapeDtypeStruct((B, T, hs), x.dtype),
        grid=(B // batch_block,),
        in_specs=[
            pl.BlockSpec((batch_block, T, C), lambda i: (i, 0, 0)),   # x (f32)
            pl.BlockSpec((C, 3 * hs), lambda i: (0, 0)),              # fused Wqkv
        ],
        out_specs=pl.BlockSpec((batch_block, T, hs), lambda i: (i, 0, 0)),
        compiler_params=pltpu.CompilerParams(
            dimension_semantics=("parallel",)),
    )(x, wqkv_bf)


def reference_head(x, wq, wk, wv):
    """Pure-JAX f32 reference mirroring the PyTorch Head.forward (eval mode)."""
    B, T, C = x.shape
    hs = wq.shape[0]
    q = x @ wq.T
    k = x @ wk.T
    v = x @ wv.T
    s = q @ jnp.swapaxes(k, -1, -2) / math.sqrt(hs)
    tril = jnp.tril(jnp.ones((T, T)))
    s = jnp.where(tril == 0, -jnp.inf, s)
    p = jax.nn.softmax(s, axis=-1)
    return p @ v


if __name__ == "__main__":
    key = jax.random.PRNGKey(0)
    kx, kq, kk, kv = jax.random.split(key, 4)

    B, T = 4, 128            # T <= block_size (256); Bt=2 -> grid=(2,), M=256
    C, hs = N_EMBD, HEAD_SIZE

    x = jax.random.normal(kx, (B, T, C), dtype=jnp.float32)

    # Deterministic parameter init (matching nn.Linear weight shapes).
    def init(k, shape, fan_in):
        bound = 1.0 / math.sqrt(fan_in)
        return jax.random.uniform(k, shape, jnp.float32, -bound, bound)

    wq = init(kq, (hs, C), C)   # Head.query.weight
    wk = init(kk, (hs, C), C)   # Head.key.weight
    wv = init(kv, (hs, C), C)   # Head.values.weight

    out = head_attention(x, wq, wk, wv)
    out = jax.block_until_ready(out)

    ref = reference_head(x, wq, wk, wv)
    # bf16 MXU operands (f32 accumulation) -> loosened tolerance.
    np.testing.assert_allclose(np.asarray(out), np.asarray(ref),
                               rtol=2e-2, atol=2e-2)

    print("KERNEL_OK")
</pallas_src>

<mosaic_0001>
module attributes {stable_mosaic.version = 11 : i64} {
  func.func @head_kernel(%arg0: i32, %arg1: memref<2x128x384xf32, #tpu.memory_space<vmem>>, %arg2: memref<384x192xbf16, #tpu.memory_space<vmem>>, %arg3: memref<2x128x64xf32, #tpu.memory_space<vmem>>) attributes {dimension_semantics = [#tpu.dimension_semantics<parallel>], iteration_bounds = array<i64: 2>, scalar_prefetch = 0 : i64, scratch_operands = 0 : i64, tpu.core_type = #tpu.core_type<tc>, window_params = [{transform_indices = @transform_0, window_bounds = array<i64: 2, 128, 384>}, {pipeline_mode = #tpu.pipeline_mode<synchronous>, transform_indices = @transform_1, window_bounds = array<i64: 384, 192>}, {transform_indices = @transform_2, window_bounds = array<i64: 2, 128, 64>}]} {
    %c0 = arith.constant 0 : index
    %c0_0 = arith.constant 0 : index
    %c0_1 = arith.constant 0 : index
    %0 = vector.load %arg1[%c0, %c0_0, %c0_1] : memref<2x128x384xf32, #tpu.memory_space<vmem>>, vector<2x128x384xf32>
    %1 = vector.shape_cast %0 : vector<2x128x384xf32> to vector<256x384xf32>
    %2 = arith.truncf %1 : vector<256x384xf32> to vector<256x384xbf16>
    %c0_2 = arith.constant 0 : index
    %c0_3 = arith.constant 0 : index
    %3 = vector.load %arg2[%c0_2, %c0_3] : memref<384x192xbf16, #tpu.memory_space<vmem>>, vector<384x192xbf16>
    %cst = arith.constant dense<0.000000e+00> : vector<256x192xf32>
    %4 = tpu.matmul %2, %3, %cst {dimension_numbers = #tpu.dot_dimension_numbers<[1], [0], [0], [1], [0, 0, 1, 1], [], []>} : vector<256x384xbf16>, vector<384x192xbf16>, vector<256x192xf32> -> vector<256x192xf32>
    %5 = tpu.iota {dimensions = array<i32: 0>} : vector<128x128xi32>
    %6 = tpu.iota {dimensions = array<i32: 1>} : vector<128x128xi32>
    %7 = arith.cmpi sle, %6, %5 : vector<128x128xi32>
    %8 = vector.extract_strided_slice %4 {offsets = [0, 0], sizes = [128, 192], strides = [1, 1]} : vector<256x192xf32> to vector<128x192xf32>
    %9 = vector.extract_strided_slice %8 {offsets = [0, 0], sizes = [128, 64], strides = [1, 1]} : vector<128x192xf32> to vector<128x64xf32>
    %10 = arith.truncf %9 : vector<128x64xf32> to vector<128x64xbf16>
    %11 = vector.extract_strided_slice %8 {offsets = [0, 64], sizes = [128, 64], strides = [1, 1]} : vector<128x192xf32> to vector<128x64xf32>
    %12 = arith.truncf %11 : vector<128x64xf32> to vector<128x64xbf16>
    %13 = vector.extract_strided_slice %8 {offsets = [0, 128], sizes = [128, 64], strides = [1, 1]} : vector<128x192xf32> to vector<128x64xf32>
    %14 = arith.truncf %13 : vector<128x64xf32> to vector<128x64xbf16>
    %cst_4 = arith.constant dense<0.000000e+00> : vector<128x128xf32>
    %15 = tpu.matmul %10, %12, %cst_4 {dimension_numbers = #tpu.dot_dimension_numbers<[1], [1], [0], [0], [0, 0, 1, 0], [], []>} : vector<128x64xbf16>, vector<128x64xbf16>, vector<128x128xf32> -> vector<128x128xf32>
    %cst_5 = arith.constant -1.000000e+30 : f32
    %16 = vector.broadcast %cst_5 : f32 to vector<128x128xf32>
    %17 = arith.select %7, %15, %16 : vector<128x128xi1>, vector<128x128xf32>
    %cst_6 = arith.constant dense<0xFF800000> : vector<128xf32>
    %18 = vector.multi_reduction <maximumf>, %17, %cst_6 [1] : vector<128x128xf32> to vector<128xf32>
    %19 = vector.shape_cast %18 : vector<128xf32> to vector<128x1xf32>
    %20 = vector.broadcast %19 : vector<128x1xf32> to vector<128x128xf32>
    %21 = arith.subf %17, %20 : vector<128x128xf32>
    %22 = math.exp %21 : vector<128x128xf32>
    %cst_7 = arith.constant dense<0.000000e+00> : vector<128xf32>
    %23 = vector.multi_reduction <add>, %22, %cst_7 [1] : vector<128x128xf32> to vector<128xf32>
    %24 = vector.shape_cast %23 : vector<128xf32> to vector<128x1xf32>
    %25 = arith.truncf %22 : vector<128x128xf32> to vector<128x128xbf16>
    %cst_8 = arith.constant dense<0.000000e+00> : vector<128x64xf32>
    %26 = tpu.matmul %25, %14, %cst_8 {dimension_numbers = #tpu.dot_dimension_numbers<[1], [0], [0], [1], [0, 0, 1, 1], [], []>} : vector<128x128xbf16>, vector<128x64xbf16>, vector<128x64xf32> -> vector<128x64xf32>
    %27 = tpu.reciprocal %24 {approx = true} : vector<128x1xf32> -> vector<128x1xf32>
    %28 = vector.broadcast %27 : vector<128x1xf32> to vector<128x64xf32>
    %29 = arith.mulf %26, %28 : vector<128x64xf32>
    %c0_9 = arith.constant 0 : index
    %c0_10 = arith.constant 0 : index
    %c0_11 = arith.constant 0 : index
    %30 = vector.load %arg3[%c0_9, %c0_10, %c0_11] : memref<2x128x64xf32, #tpu.memory_space<vmem>>, vector<1x128x64xf32>
    %31 = vector.shape_cast %30 : vector<1x128x64xf32> to vector<128x64xf32>
    %32 = vector.shape_cast %29 : vector<128x64xf32> to vector<1x128x64xf32>
    tpu.vector_store %arg3[%c0_9, %c0_10, %c0_11], %32 {strides = array<i32>} : memref<2x128x64xf32, #tpu.memory_space<vmem>>, vector<1x128x64xf32>,
    %33 = vector.extract_strided_slice %4 {offsets = [128, 0], sizes = [128, 192], strides = [1, 1]} : vector<256x192xf32> to vector<128x192xf32>
    %34 = vector.extract_strided_slice %33 {offsets = [0, 0], sizes = [128, 64], strides = [1, 1]} : vector<128x192xf32> to vector<128x64xf32>
    %35 = arith.truncf %34 : vector<128x64xf32> to vector<128x64xbf16>
    %36 = vector.extract_strided_slice %33 {offsets = [0, 64], sizes = [128, 64], strides = [1, 1]} : vector<128x192xf32> to vector<128x64xf32>
    %37 = arith.truncf %36 : vector<128x64xf32> to vector<128x64xbf16>
    %38 = vector.extract_strided_slice %33 {offsets = [0, 128], sizes = [128, 64], strides = [1, 1]} : vector<128x192xf32> to vector<128x64xf32>
    %39 = arith.truncf %38 : vector<128x64xf32> to vector<128x64xbf16>
    %cst_12 = arith.constant dense<0.000000e+00> : vector<128x128xf32>
    %40 = tpu.matmul %35, %37, %cst_12 {dimension_numbers = #tpu.dot_dimension_numbers<[1], [1], [0], [0], [0, 0, 1, 0], [], []>} : vector<128x64xbf16>, vector<128x64xbf16>, vector<128x128xf32> -> vector<128x128xf32>
    %cst_13 = arith.constant -1.000000e+30 : f32
    %41 = vector.broadcast %cst_13 : f32 to vector<128x128xf32>
    %42 = arith.select %7, %40, %41 : vector<128x128xi1>, vector<128x128xf32>
    %cst_14 = arith.constant dense<0xFF800000> : vector<128xf32>
    %43 = vector.multi_reduction <maximumf>, %42, %cst_14 [1] : vector<128x128xf32> to vector<128xf32>
    %44 = vector.shape_cast %43 : vector<128xf32> to vector<128x1xf32>
    %45 = vector.broadcast %44 : vector<128x1xf32> to vector<128x128xf32>
    %46 = arith.subf %42, %45 : vector<128x128xf32>
    %47 = math.exp %46 : vector<128x128xf32>
    %cst_15 = arith.constant dense<0.000000e+00> : vector<128xf32>
    %48 = vector.multi_reduction <add>, %47, %cst_15 [1] : vector<128x128xf32> to vector<128xf32>
    %49 = vector.shape_cast %48 : vector<128xf32> to vector<128x1xf32>
    %50 = arith.truncf %47 : vector<128x128xf32> to vector<128x128xbf16>
    %cst_16 = arith.constant dense<0.000000e+00> : vector<128x64xf32>
    %51 = tpu.matmul %50, %39, %cst_16 {dimension_numbers = #tpu.dot_dimension_numbers<[1], [0], [0], [1], [0, 0, 1, 1], [], []>} : vector<128x128xbf16>, vector<128x64xbf16>, vector<128x64xf32> -> vector<128x64xf32>
    %52 = tpu.reciprocal %49 {approx = true} : vector<128x1xf32> -> vector<128x1xf32>
    %53 = vector.broadcast %52 : vector<128x1xf32> to vector<128x64xf32>
    %54 = arith.mulf %51, %53 : vector<128x64xf32>
    %c1 = arith.constant 1 : index
    %c0_17 = arith.constant 0 : index
    %c0_18 = arith.constant 0 : index
    %55 = vector.load %arg3[%c1, %c0_17, %c0_18] : memref<2x128x64xf32, #tpu.memory_space<vmem>>, vector<1x128x64xf32>
    %56 = vector.shape_cast %55 : vector<1x128x64xf32> to vector<128x64xf32>
    %57 = vector.shape_cast %54 : vector<128x64xf32> to vector<1x128x64xf32>
    tpu.vector_store %arg3[%c1, %c0_17, %c0_18], %57 {strides = array<i32>} : memref<2x128x64xf32, #tpu.memory_space<vmem>>, vector<1x128x64xf32>,
    return
  }
  func.func @transform_0(%arg0: i32) -> (i32, i32, i32) {
    %c0_i32 = arith.constant 0 : i32
    %c0_i32_0 = arith.constant 0 : i32
    %c0_i32_1 = arith.constant 0 : i32
    return %arg0, %c0_i32, %c0_i32_0 : i32, i32, i32
  }
  func.func @transform_1(%arg0: i32) -> (i32, i32) {
    %c0_i32 = arith.constant 0 : i32
    %c0_i32_0 = arith.constant 0 : i32
    %c0_i32_1 = arith.constant 0 : i32
    return %c0_i32, %c0_i32_0 : i32, i32
  }
  func.func @transform_2(%arg0: i32) -> (i32, i32, i32) {
    %c0_i32 = arith.constant 0 : i32
    %c0_i32_0 = arith.constant 0 : i32
    %c0_i32_1 = arith.constant 0 : i32
    return %arg0, %c0_i32, %c0_i32_0 : i32, i32, i32
  }
}

</mosaic_0001>

<llo_original>
// kernel: tpu_custom_call.1
$region0: #{tpu_custom_call.1}
  #allocation0 [shape = 'u32[]', space=smem, size = 0x4, offset = 0x4, fixed_abs, tag = 'smem constant byte address 0x4 - core index']
  #allocation1 [shape = 'u32[144,128]{1,0:T(1,128)}', space=vmem, size = 0x12000, scoped, tag = 'internal scratch']
  %s0 = inlined_call_operand.hbm [shape: f32[4,128,384], index: 0, kind: input, shape index: {}]
  %s1 = inlined_call_operand.vmem [shape: bf16[384,192], index: 1, kind: input, shape index: {}]
  %s2 = inlined_call_operand.vmem [shape: f32[4,128,64], index: 2, kind: output, shape index: {}]
  %s3 = sld [smem:[#allocation0]]
  $region45: #{tpu_custom_call.1} parent=0
    _
  %s5 = ssub.s32 1, %s3
  %s6 = scalar_select 0, %s5, %s3
  $region1: #{tpu_custom_call.1} parent=0
    #allocation2 [shape = 'u8[786432]{0}', space=vmem, size = 0xc0000, scoped, tag = 'input window, operand 0']
    #allocation3 [shape = 's32[2]{0}', space=sflag, size = 0x8, scoped, tag = 'scoped memory for tpu_custom_call.1']
    %7 = vsyncpa [#allocation3], 0
    %s8 = scalar_lea.sflag [#allocation3], 1
    %9 = vsyncpa %s8, 0
    loop: start=0, step=1, limit=4
    $region2: #{tpu_custom_call.1} parent=1 // loop_pre_header
      _
    $region3: #{tpu_custom_call.1} parent=1 // loop_header
      %s11 = sphi 0, %s15
      %p12 = scmp.ge.s32.totalorder %s11, 4
      %s21 = sphi 0, %s23
      %s24 = sphi 0, %s21
      %s25 = sphi 0, %s24
      %s41 = sphi 0, %s25
      %s45 = sphi 0, %s45
      %s47 = sphi 0, %s45
      %s48 = sphi 0, %s47
      %s62 = sphi 0, %s48
      %s68 = sphi 0, %s70
      %s71 = sphi 0, %s68
      %s72 = sphi 0, %s71
      %s88 = sphi 0, %s72
    $region4: #{tpu_custom_call.1} parent=1 // loop_header_branch
      %14 = sbr.rel (%p12) target = $region8
    $region5: #{tpu_custom_call.1} parent=1 // loop_body
      %s16 = ssub.s32 %s11, 1
      %s17 = ssub.s32 %s11, 2
      %s18 = sadd.s32 %s11, 1
      %s19 = ssub.s32 %s11, %s18
      %p20 = scmp.eq.s32.totalorder %s19, 0
      %s22 = sadd.s32 %s21, 1
      %s23 = scalar_select %p20, %s21, %s22
      %p26 = pneg %p20
      %p27 = scmp.eq.s32.totalorder %s11, 1
      %p28 = por %p26, %p27
      %p29 = scmp.ne.s32.totalorder %s21, %s24
      %p30 = scmp.eq.s32.totalorder %s11, 0
      %p31 = por %p29, %p30
      %p32 = scmp.ne.s32.totalorder %s21, %s24
      %p33 = scmp.eq.s32.totalorder %s16, 1
      %p34 = por %p32, %p33
      %p35 = scmp.ne.s32.totalorder %s24, %s25
      %p36 = scmp.eq.s32.totalorder %s16, 0
      %p37 = por %p35, %p36
      %p38 = scmp.ne.s32.totalorder %s24, %s25
      %p39 = scmp.eq.s32.totalorder %s17, 1
      %p40 = por %p38, %p39
      %p42 = scmp.ne.s32.totalorder %s25, %s41
      %p43 = scmp.eq.s32.totalorder %s17, 0
      %p44 = por %p42, %p43
      %s46 = sadd.s32 %s45, 1
      %p49 = scmp.eq.s32.totalorder %s11, 1
      %p50 = scmp.ne.s32.totalorder %s45, %s47
      %p51 = scmp.eq.s32.totalorder %s11, 0
      %p52 = por %p50, %p51
      %p53 = scmp.ne.s32.totalorder %s45, %s47
      %p54 = scmp.eq.s32.totalorder %s16, 1
      %p55 = por %p53, %p54
      %p56 = scmp.ne.s32.totalorder %s47, %s48
      %p57 = scmp.eq.s32.totalorder %s16, 0
      %p58 = por %p56, %p57
      %p59 = scmp.ne.s32.totalorder %s47, %s48
      %p60 = scmp.eq.s32.totalorder %s17, 1
      %p61 = por %p59, %p60
      %p63 = scmp.ne.s32.totalorder %s48, %s62
      %p64 = scmp.eq.s32.totalorder %s17, 0
      %p65 = por %p63, %p64
      %s66 = ssub.s32 %s11, %s18
      %p67 = scmp.eq.s32.totalorder %s66, 0
      %s69 = sadd.s32 %s68, 1
      %s70 = scalar_select %p67, %s68, %s69
      %p73 = pneg %p67
      %p74 = scmp.eq.s32.totalorder %s11, 1
      %p75 = por %p73, %p74
      %p76 = scmp.ne.s32.totalorder %s68, %s71
      %p77 = scmp.eq.s32.totalorder %s11, 0
      %p78 = por %p76, %p77
      %p79 = scmp.ne.s32.totalorder %s68, %s71
      %p80 = scmp.eq.s32.totalorder %s16, 1
      %p81 = por %p79, %p80
      %p82 = scmp.ne.s32.totalorder %s71, %s72
      %p83 = scmp.eq.s32.totalorder %s16, 0
      %p84 = por %p82, %p83
      %p85 = scmp.ne.s32.totalorder %s71, %s72
      %p86 = scmp.eq.s32.totalorder %s17, 1
      %p87 = por %p85, %p86
      %p89 = scmp.ne.s32.totalorder %s72, %s88
      %p90 = scmp.eq.s32.totalorder %s17, 0
      %p91 = por %p89, %p90
      %p92 = scmp.le.s32.totalorder 1, %s11
      %p93 = scmp.lt.s32.totalorder %s11, 3
      %p94 = pnand %p92, %p93
      %p95 = pneg %p94
      // Predicated region
      $region9: #{tpu_custom_call.1} parent=5 // pred_check
        _
      $region10: #{tpu_custom_call.1} parent=5 // pred_check_branch
        %97 = sbr.rel (%p94) target = $region12
      $region11: #{tpu_custom_call.1} parent=5 // pred_region
        %s98 = ssub.s32 %s11, 1
        // Predicated region
        $region13: #{tpu_custom_call.1} parent=11 // pred_check
          %p99 = pneg %p58
        $region14: #{tpu_custom_call.1} parent=11 // pred_check_branch
          %101 = sbr.rel (%p99) target = $region16
        $region15: #{tpu_custom_call.1} parent=11 // pred_region
          _
        $region16: #{tpu_custom_call.1} parent=11 // pred_fallthru
          _
      $region12: #{tpu_custom_call.1} parent=5 // pred_fallthru
        _
      %p102 = scmp.lt.s32.totalorder %s11, 2
      // Predicated region
      $region17: #{tpu_custom_call.1} parent=5 // pred_check
        %p103 = pneg %p102
      $region18: #{tpu_custom_call.1} parent=5 // pred_check_branch
        %105 = sbr.rel (%p103) target = $region20
      $region19: #{tpu_custom_call.1} parent=5 // pred_region
        // Predicated region
        $region21: #{tpu_custom_call.1} parent=19 // pred_check
          %p106 = pneg %p31
        $region22: #{tpu_custom_call.1} parent=19 // pred_check_branch
          %108 = sbr.rel (%p106) target = $region24
        $region23: #{tpu_custom_call.1} parent=19 // pred_region
          %s109 = sand.u32 %s21, 1
          %s110 = scalar_lea.sflag [#allocation3], %s109
          %s111 = sand.u32 %s21, 1
          %s112 = smul.addr %s111, 768
          %s113 = scalar_lea.vmem [#allocation2], %s112
          %s114 = smul.u32 2, %s11
          %s116 = ssub.s32 12288, 12288
          %117 = vsyncadd %s110, %s116
          %s118 = smul.addr %s114, 48
          %s119 = smul.addr %s118, 128
          %s120 = scalar_lea.hbm %s0, %s119
          %s121 = sshll.u32 %s113, 4
          %s122 = int_to_ptr.vmem [resolvable:$true] %s121
          %127 = dma.hbm_to_vmem [thread:$0]  %s120, 12288, %s122, %s110, 384, 384, 24
        $region24: #{tpu_custom_call.1} parent=19 // pred_fallthru
          _
      $region20: #{tpu_custom_call.1} parent=5 // pred_fallthru
        _
      %p128 = scmp.le.s32.totalorder 1, %s11
      %p129 = scmp.lt.s32.totalorder %s11, 3
      %p130 = pnand %p128, %p129
      %p131 = pneg %p130
      // Predicated region
      $region25: #{tpu_custom_call.1} parent=5 // pred_check
        _
      $region26: #{tpu_custom_call.1} parent=5 // pred_check_branch
        %133 = sbr.rel (%p130) target = $region28
      $region27: #{tpu_custom_call.1} parent=5 // pred_region
        %s134 = ssub.s32 %s11, 1
        %s135 = sand.u32 %s24, 1
        %s136 = scalar_lea.sflag [#allocation3], %s135
        %s137 = sand.u32 %s24, 1
        %s138 = smul.addr %s137, 768
        %s139 = scalar_lea.vmem [#allocation2], %s138
        // Predicated region
        $region29: #{tpu_custom_call.1} parent=27 // pred_check
          %p140 = pneg %p37
        $region30: #{tpu_custom_call.1} parent=27 // pred_check_branch
          %142 = sbr.rel (%p140) target = $region32
        $region31: #{tpu_custom_call.1} parent=27 // pred_region
          %143 = dma.done %s136, 12288
        $region32: #{tpu_custom_call.1} parent=27 // pred_fallthru
          _
        %s144 = sand.u32 %s24, 1
        %s145 = scalar_lea.sflag [#allocation3], %s144
        %s146 = sand.u32 %s24, 1
        %s147 = smul.addr %s146, 768
        %s148 = scalar_lea.vmem [#allocation2], %s147
        %p149 = pneg %p37
        %p150 = pneg %p34
        %p151 = pneg %p58
        %p152 = pneg %p55
        %p153 = pneg %p84
        %p154 = pneg %p81
        %s155 = smul.u32 2, %s16
        %p156 = scmp.lt.s32.totalorder %s155, 3
        %s157 = scalar_select %p156, %s155, 3
        %s158 = smul.addr %s157, 16
        %s159 = smul.addr %s158, 8
        %s160 = scalar_lea.vmem %s2, %s159
        %s161 = smul.u32 2, %s16
        %s162 = smul.u32 2, %s16
        %p163 = scmp.lt.s32.totalorder %s162, 3
        %s164 = scalar_select %p163, %s162, 3
        %s165 = smul.addr %s164, 16
        %s166 = smul.addr %s165, 8
        %s167 = scalar_lea.vmem %s2, %s166
        %s168 = smul.u32 2, %s16
        %v170 = vld [vmem:[%s139] sm:$0xff]
        %v171 = vld [vmem:[%s139 + $0x8] sm:$0xff]
        %v172 = vld [vmem:[%s139 + $0x10] sm:$0xff]
        %v173 = vld [vmem:[%s139 + $0x18] sm:$0xff]
        %v174 = vld [vmem:[%s139 + $0x20] sm:$0xff]
        %v175 = vld [vmem:[%s139 + $0x28] sm:$0xff]
        %v176 = vld [vmem:[%s139 + $0x30] sm:$0xff]
        %v177 = vld [vmem:[%s139 + $0x38] sm:$0xff]
        %v178 = vld [vmem:[%s139 + $0x40] sm:$0xff]
        %v179 = vld [vmem:[%s139 + $0x48] sm:$0xff]
        %v180 = vld [vmem:[%s139 + $0x50] sm:$0xff]
        %v181 = vld [vmem:[%s139 + $0x58] sm:$0xff]
        %v182 = vld [vmem:[%s139 + $0x60] sm:$0xff]
        %v183 = vld [vmem:[%s139 + $0x68] sm:$0xff]
        %v184 = vld [vmem:[%s139 + $0x70] sm:$0xff]
        %v185 = vld [vmem:[%s139 + $0x78] sm:$0xff]
        %v186 = vld [vmem:[%s139 + $0x80] sm:$0xff]
        %v187 = vld [vmem:[%s139 + $0x88] sm:$0xff]
        %v188 = vld [vmem:[%s139 + $0x90] sm:$0xff]
        %v189 = vld [vmem:[%s139 + $0x98] sm:$0xff]
        %v190 = vld [vmem:[%s139 + $0xa0] sm:$0xff]
        %v191 = vld [vmem:[%s139 + $0xa8] sm:$0xff]
        %v192 = vld [vmem:[%s139 + $0xb0] sm:$0xff]
        %v193 = vld [vmem:[%s139 + $0xb8] sm:$0xff]
        %v194 = vld [vmem:[%s139 + $0xc0] sm:$0xff]
        %v195 = vld [vmem:[%s139 + $0xc8] sm:$0xff]
        %v196 = vld [vmem:[%s139 + $0xd0] sm:$0xff]
        %v197 = vld [vmem:[%s139 + $0xd8] sm:$0xff]
        %v198 = vld [vmem:[%s139 + $0xe0] sm:$0xff]
        %v199 = vld [vmem:[%s139 + $0xe8] sm:$0xff]
        %v200 = vld [vmem:[%s139 + $0xf0] sm:$0xff]
        %v201 = vld [vmem:[%s139 + $0xf8] sm:$0xff]
        %v202 = vld [vmem:[%s139 + $0x100] sm:$0xff]
        %v203 = vld [vmem:[%s139 + $0x108] sm:$0xff]
        %v204 = vld [vmem:[%s139 + $0x110] sm:$0xff]
        %v205 = vld [vmem:[%s139 + $0x118] sm:$0xff]
        %v206 = vld [vmem:[%s139 + $0x120] sm:$0xff]
        %v207 = vld [vmem:[%s139 + $0x128] sm:$0xff]
        %v208 = vld [vmem:[%s139 + $0x130] sm:$0xff]
        %v209 = vld [vmem:[%s139 + $0x138] sm:$0xff]
        %v210 = vld [vmem:[%s139 + $0x140] sm:$0xff]
        %v211 = vld [vmem:[%s139 + $0x148] sm:$0xff]
        %v212 = vld [vmem:[%s139 + $0x150] sm:$0xff]
        %v213 = vld [vmem:[%s139 + $0x158] sm:$0xff]
        %v214 = vld [vmem:[%s139 + $0x160] sm:$0xff]
        %v215 = vld [vmem:[%s139 + $0x168] sm:$0xff]
        %v216 = vld [vmem:[%s139 + $0x170] sm:$0xff]
        %v217 = vld [vmem:[%s139 + $0x178] sm:$0xff]
        %v218 = vld [vmem:[%s139 + $0x180] sm:$0xff]
        %v219 = vld [vmem:[%s139 + $0x188] sm:$0xff]
        %v220 = vld [vmem:[%s139 + $0x190] sm:$0xff]
        %v221 = vld [vmem:[%s139 + $0x198] sm:$0xff]
        %v222 = vld [vmem:[%s139 + $0x1a0] sm:$0xff]
        %v223 = vld [vmem:[%s139 + $0x1a8] sm:$0xff]
        %v224 = vld [vmem:[%s139 + $0x1b0] sm:$0xff]
        %v225 = vld [vmem:[%s139 + $0x1b8] sm:$0xff]
        %v226 = vld [vmem:[%s139 + $0x1c0] sm:$0xff]
        %v227 = vld [vmem:[%s139 + $0x1c8] sm:$0xff]
        %v228 = vld [vmem:[%s139 + $0x1d0] sm:$0xff]
        %v229 = vld [vmem:[%s139 + $0x1d8] sm:$0xff]
        %v230 = vld [vmem:[%s139 + $0x1e0] sm:$0xff]
        %v231 = vld [vmem:[%s139 + $0x1e8] sm:$0xff]
        %v232 = vld [vmem:[%s139 + $0x1f0] sm:$0xff]
        %v233 = vld [vmem:[%s139 + $0x1f8] sm:$0xff]
        %v234 = vld [vmem:[%s139 + $0x200] sm:$0xff]
        %v235 = vld [vmem:[%s139 + $0x208] sm:$0xff]
        %v236 = vld [vmem:[%s139 + $0x210] sm:$0xff]
        %v237 = vld [vmem:[%s139 + $0x218] sm:$0xff]
        %v238 = vld [vmem:[%s139 + $0x220] sm:$0xff]
        %v239 = vld [vmem:[%s139 + $0x228] sm:$0xff]
        %v240 = vld [vmem:[%s139 + $0x230] sm:$0xff]
        %v241 = vld [vmem:[%s139 + $0x238] sm:$0xff]
        %v242 = vld [vmem:[%s139 + $0x240] sm:$0xff]
        %v243 = vld [vmem:[%s139 + $0x248] sm:$0xff]
        %v244 = vld [vmem:[%s139 + $0x250] sm:$0xff]
        %v245 = vld [vmem:[%s139 + $0x258] sm:$0xff]
        %v246 = vld [vmem:[%s139 + $0x260] sm:$0xff]
        %v247 = vld [vmem:[%s139 + $0x268] sm:$0xff]
        %v248 = vld [vmem:[%s139 + $0x270] sm:$0xff]
        %v249 = vld [vmem:[%s139 + $0x278] sm:$0xff]
        %v250 = vld [vmem:[%s139 + $0x280] sm:$0xff]
        %v251 = vld [vmem:[%s139 + $0x288] sm:$0xff]
        %v252 = vld [vmem:[%s139 + $0x290] sm:$0xff]
        %v253 = vld [vmem:[%s139 + $0x298] sm:$0xff]
        %v254 = vld [vmem:[%s139 + $0x2a0] sm:$0xff]
        %v255 = vld [vmem:[%s139 + $0x2a8] sm:$0xff]
        %v256 = vld [vmem:[%s139 + $0x2b0] sm:$0xff]
        %v257 = vld [vmem:[%s139 + $0x2b8] sm:$0xff]
        %v258 = vld [vmem:[%s139 + $0x2c0] sm:$0xff]
        %v259 = vld [vmem:[%s139 + $0x2c8] sm:$0xff]
        %v260 = vld [vmem:[%s139 + $0x2d0] sm:$0xff]
        %v261 = vld [vmem:[%s139 + $0x2d8] sm:$0xff]
        %v262 = vld [vmem:[%s139 + $0x2e0] sm:$0xff]
        %v263 = vld [vmem:[%s139 + $0x2e8] sm:$0xff]
        %v264 = vld [vmem:[%s139 + $0x2f0] sm:$0xff]
        %v265 = vld [vmem:[%s139 + $0x2f8] sm:$0xff]
        %v266 = vpack.c.bf16 %v173, %v170
        %v267 = vpack.c.bf16 %v174, %v171
        %v268 = vpack.c.bf16 %v175, %v172
        %v269 = vpack.c.bf16 %v179, %v176
        %v270 = vpack.c.bf16 %v180, %v177
        %v271 = vpack.c.bf16 %v181, %v178
        %v272 = vpack.c.bf16 %v185, %v182
        %v273 = vpack.c.bf16 %v186, %v183
        %v274 = vpack.c.bf16 %v187, %v184
        %v275 = vpack.c.bf16 %v191, %v188
        %v276 = vpack.c.bf16 %v192, %v189
        %v277 = vpack.c.bf16 %v193, %v190
        %v278 = vpack.c.bf16 %v197, %v194
        %v279 = vpack.c.bf16 %v198, %v195
        %v280 = vpack.c.bf16 %v199, %v196
        %v281 = vpack.c.bf16 %v203, %v200
        %v282 = vpack.c.bf16 %v204, %v201
        %v283 = vpack.c.bf16 %v205, %v202
        %v284 = vpack.c.bf16 %v209, %v206
        %v285 = vpack.c.bf16 %v210, %v207
        %v286 = vpack.c.bf16 %v211, %v208
        %v287 = vpack.c.bf16 %v215, %v212
        %v288 = vpack.c.bf16 %v216, %v213
        %v289 = vpack.c.bf16 %v217, %v214
        %v290 = vpack.c.bf16 %v221, %v218
        %v291 = vpack.c.bf16 %v222, %v219
        %v292 = vpack.c.bf16 %v223, %v220
        %v293 = vpack.c.bf16 %v227, %v224
        %v294 = vpack.c.bf16 %v228, %v225
        %v295 = vpack.c.bf16 %v229, %v226
        %v296 = vpack.c.bf16 %v233, %v230
        %v297 = vpack.c.bf16 %v234, %v231
        %v298 = vpack.c.bf16 %v235, %v232
        %v299 = vpack.c.bf16 %v239, %v236
        %v300 = vpack.c.bf16 %v240, %v237
        %v301 = vpack.c.bf16 %v241, %v238
        %v302 = vpack.c.bf16 %v245, %v242
        %v303 = vpack.c.bf16 %v246, %v243
        %v304 = vpack.c.bf16 %v247, %v244
        %v305 = vpack.c.bf16 %v251, %v248
        %v306 = vpack.c.bf16 %v252, %v249
        %v307 = vpack.c.bf16 %v253, %v250
        %v308 = vpack.c.bf16 %v257, %v254
        %v309 = vpack.c.bf16 %v258, %v255
        %v310 = vpack.c.bf16 %v259, %v256
        %v311 = vpack.c.bf16 %v263, %v260
        %v312 = vpack.c.bf16 %v264, %v261
        %v313 = vpack.c.bf16 %v265, %v262
        %v314 = vld [vmem:[%s1] sm:$0xff]
        %v315 = vld [vmem:[%s1 + $0x8] sm:$0xff]
        %v316 = vld [vmem:[%s1 + $0x10] sm:$0xff]
        %v317 = vld [vmem:[%s1 + $0x18] sm:$0xff]
        %v318 = vld [vmem:[%s1 + $0x20] sm:$0xff]
        %v319 = vld [vmem:[%s1 + $0x28] sm:$0xff]
        %v320 = vld [vmem:[%s1 + $0x30] sm:$0xff]
        %v321 = vld [vmem:[%s1 + $0x38] sm:$0xff]
        %v322 = vld [vmem:[%s1 + $0x40] sm:$0xff]
        %v323 = vld [vmem:[%s1 + $0x48] sm:$0xff]
        %v324 = vld [vmem:[%s1 + $0x50] sm:$0xff]
        %v325 = vld [vmem:[%s1 + $0x58] sm:$0xff]
        %v326 = vld [vmem:[%s1 + $0x60] sm:$0xff]
        %v327 = vld [vmem:[%s1 + $0x68] sm:$0xff]
        %v328 = vld [vmem:[%s1 + $0x70] sm:$0xff]
        %v329 = vld [vmem:[%s1 + $0x78] sm:$0xff]
        %v330 = vld [vmem:[%s1 + $0x80] sm:$0xff]
        %v331 = vld [vmem:[%s1 + $0x88] sm:$0xff]
        %v332 = vld [vmem:[%s1 + $0x90] sm:$0xff]
        %v333 = vld [vmem:[%s1 + $0x98] sm:$0xff]
        %v334 = vld [vmem:[%s1 + $0xa0] sm:$0xff]
        %v335 = vld [vmem:[%s1 + $0xa8] sm:$0xff]
        %v336 = vld [vmem:[%s1 + $0xb0] sm:$0xff]
        %v337 = vld [vmem:[%s1 + $0xb8] sm:$0xff]
        %v338 = vld [vmem:[%s1 + $0xc0] sm:$0xff]
        %v339 = vld [vmem:[%s1 + $0xc8] sm:$0xff]
        %v340 = vld [vmem:[%s1 + $0xd0] sm:$0xff]
        %v341 = vld [vmem:[%s1 + $0xd8] sm:$0xff]
        %v342 = vld [vmem:[%s1 + $0xe0] sm:$0xff]
        %v343 = vld [vmem:[%s1 + $0xe8] sm:$0xff]
        %v344 = vld [vmem:[%s1 + $0xf0] sm:$0xff]
        %v345 = vld [vmem:[%s1 + $0xf8] sm:$0xff]
        %v346 = vld [vmem:[%s1 + $0x100] sm:$0xff]
        %v347 = vld [vmem:[%s1 + $0x108] sm:$0xff]
        %v348 = vld [vmem:[%s1 + $0x110] sm:$0xff]
        %v349 = vld [vmem:[%s1 + $0x118] sm:$0xff]
        %v350 = vld [vmem:[%s1 + $0x120] sm:$0xff]
        %v351 = vld [vmem:[%s1 + $0x128] sm:$0xff]
        %v352 = vld [vmem:[%s1 + $0x130] sm:$0xff]
        %v353 = vld [vmem:[%s1 + $0x138] sm:$0xff]
        %v354 = vld [vmem:[%s1 + $0x140] sm:$0xff]
        %v355 = vld [vmem:[%s1 + $0x148] sm:$0xff]
        %v356 = vld [vmem:[%s1 + $0x150] sm:$0xff]
        %v357 = vld [vmem:[%s1 + $0x158] sm:$0xff]
        %v358 = vld [vmem:[%s1 + $0x160] sm:$0xff]
        %v359 = vld [vmem:[%s1 + $0x168] sm:$0xff]
        %v360 = vld [vmem:[%s1 + $0x170] sm:$0xff]
        %v361 = vld [vmem:[%s1 + $0x178] sm:$0xff]
        %v410 = vunpack.c.l.b16 %v314
        %v411 = vunpack.c.h.b16 %v314
        %v412 = vunpack.c.l.b16 %v315
        %v413 = vunpack.c.h.b16 %v315
        %v414 = vunpack.c.l.b16 %v316
        %v415 = vunpack.c.h.b16 %v316
        %v416 = vunpack.c.l.b16 %v317
        %v417 = vunpack.c.h.b16 %v317
        %v418 = vunpack.c.l.b16 %v318
        %v419 = vunpack.c.h.b16 %v318
        %v420 = vunpack.c.l.b16 %v319
        %v421 = vunpack.c.h.b16 %v319
        %v422 = vunpack.c.l.b16 %v320
        %v423 = vunpack.c.h.b16 %v320
        %v424 = vunpack.c.l.b16 %v321
        %v425 = vunpack.c.h.b16 %v321
        %v426 = vunpack.c.l.b16 %v322
        %v427 = vunpack.c.h.b16 %v322
        %v428 = vunpack.c.l.b16 %v323
        %v429 = vunpack.c.h.b16 %v323
        %v430 = vunpack.c.l.b16 %v324
        %v431 = vunpack.c.h.b16 %v324
        %v432 = vunpack.c.l.b16 %v325
        %v433 = vunpack.c.h.b16 %v325
        %v434 = vunpack.c.l.b16 %v326
        %v435 = vunpack.c.h.b16 %v326
        %v436 = vunpack.c.l.b16 %v327
        %v437 = vunpack.c.h.b16 %v327
        %v438 = vunpack.c.l.b16 %v328
        %v439 = vunpack.c.h.b16 %v328
        %v440 = vunpack.c.l.b16 %v329
        %v441 = vunpack.c.h.b16 %v329
        %v442 = vunpack.c.l.b16 %v330
        %v443 = vunpack.c.h.b16 %v330
        %v444 = vunpack.c.l.b16 %v331
        %v445 = vunpack.c.h.b16 %v331
        %v446 = vunpack.c.l.b16 %v332
        %v447 = vunpack.c.h.b16 %v332
        %v448 = vunpack.c.l.b16 %v333
        %v449 = vunpack.c.h.b16 %v333
        %v450 = vunpack.c.l.b16 %v334
        %v451 = vunpack.c.h.b16 %v334
        %v452 = vunpack.c.l.b16 %v335
        %v453 = vunpack.c.h.b16 %v335
        %v454 = vunpack.c.l.b16 %v336
        %v455 = vunpack.c.h.b16 %v336
        %v456 = vunpack.c.l.b16 %v337
        %v457 = vunpack.c.h.b16 %v337
        %v458 = vunpack.c.l.b16 %v338
        %v459 = vunpack.c.h.b16 %v338
        %v460 = vunpack.c.l.b16 %v339
        %v461 = vunpack.c.h.b16 %v339
        %v462 = vunpack.c.l.b16 %v340
        %v463 = vunpack.c.h.b16 %v340
        %v464 = vunpack.c.l.b16 %v341
        %v465 = vunpack.c.h.b16 %v341
        %v466 = vunpack.c.l.b16 %v342
        %v467 = vunpack.c.h.b16 %v342
        %v468 = vunpack.c.l.b16 %v343
        %v469 = vunpack.c.h.b16 %v343
        %v470 = vunpack.c.l.b16 %v344
        %v471 = vunpack.c.h.b16 %v344
        %v472 = vunpack.c.l.b16 %v345
        %v473 = vunpack.c.h.b16 %v345
        %v474 = vunpack.c.l.b16 %v346
        %v475 = vunpack.c.h.b16 %v346
        %v476 = vunpack.c.l.b16 %v347
        %v477 = vunpack.c.h.b16 %v347
        %v478 = vunpack.c.l.b16 %v348
        %v479 = vunpack.c.h.b16 %v348
        %v480 = vunpack.c.l.b16 %v349
        %v481 = vunpack.c.h.b16 %v349
        %v482 = vunpack.c.l.b16 %v350
        %v483 = vunpack.c.h.b16 %v350
        %v484 = vunpack.c.l.b16 %v351
        %v485 = vunpack.c.h.b16 %v351
        %v486 = vunpack.c.l.b16 %v352
        %v487 = vunpack.c.h.b16 %v352
        %v488 = vunpack.c.l.b16 %v353
        %v489 = vunpack.c.h.b16 %v353
        %v490 = vunpack.c.l.b16 %v354
        %v491 = vunpack.c.h.b16 %v354
        %v492 = vunpack.c.l.b16 %v355
        %v493 = vunpack.c.h.b16 %v355
        %v494 = vunpack.c.l.b16 %v356
        %v495 = vunpack.c.h.b16 %v356
        %v496 = vunpack.c.l.b16 %v357
        %v497 = vunpack.c.h.b16 %v357
        %v498 = vunpack.c.l.b16 %v358
        %v499 = vunpack.c.h.b16 %v358
        %v500 = vunpack.c.l.b16 %v359
        %v501 = vunpack.c.h.b16 %v359
        %v502 = vunpack.c.l.b16 %v360
        %v503 = vunpack.c.h.b16 %v360
        %v504 = vunpack.c.l.b16 %v361
        %v505 = vunpack.c.h.b16 %v361
        %v506 = vpack.c.b16 %v412, %v410
        %v507 = vpack.c.b16 %v413, %v411
        %v508 = vpack.c.b16 %v416, %v414
        %v509 = vpack.c.b16 %v417, %v415
        %v510 = vpack.c.b16 %v420, %v418
        %v511 = vpack.c.b16 %v421, %v419
        %v512 = vpack.c.b16 %v424, %v422
        %v513 = vpack.c.b16 %v425, %v423
        %v514 = vpack.c.b16 %v428, %v426
        %v515 = vpack.c.b16 %v429, %v427
        %v516 = vpack.c.b16 %v432, %v430
        %v517 = vpack.c.b16 %v433, %v431
        %v518 = vpack.c.b16 %v436, %v434
        %v519 = vpack.c.b16 %v437, %v435
        %v520 = vpack.c.b16 %v440, %v438
        %v521 = vpack.c.b16 %v441, %v439
        %v522 = vpack.c.b16 %v444, %v442
        %v523 = vpack.c.b16 %v445, %v443
        %v524 = vpack.c.b16 %v448, %v446
        %v525 = vpack.c.b16 %v449, %v447
        %v526 = vpack.c.b16 %v452, %v450
        %v527 = vpack.c.b16 %v453, %v451
        %v528 = vpack.c.b16 %v456, %v454
        %v529 = vpack.c.b16 %v457, %v455
        %v530 = vpack.c.b16 %v460, %v458
        %v531 = vpack.c.b16 %v461, %v459
        %v532 = vpack.c.b16 %v464, %v462
        %v533 = vpack.c.b16 %v465, %v463
        %v534 = vpack.c.b16 %v468, %v466
        %v535 = vpack.c.b16 %v469, %v467
        %v536 = vpack.c.b16 %v472, %v470
        %v537 = vpack.c.b16 %v473, %v471
        %v538 = vpack.c.b16 %v476, %v474
        %v539 = vpack.c.b16 %v477, %v475
        %v540 = vpack.c.b16 %v480, %v478
        %v541 = vpack.c.b16 %v481, %v479
        %v542 = vpack.c.b16 %v484, %v482
        %v543 = vpack.c.b16 %v485, %v483
        %v544 = vpack.c.b16 %v488, %v486
        %v545 = vpack.c.b16 %v489, %v487
        %v546 = vpack.c.b16 %v492, %v490
        %v547 = vpack.c.b16 %v493, %v491
        %v548 = vpack.c.b16 %v496, %v494
        %v549 = vpack.c.b16 %v497, %v495
        %v550 = vpack.c.b16 %v500, %v498
        %v551 = vpack.c.b16 %v501, %v499
        %v552 = vpack.c.b16 %v504, %v502
        %v553 = vpack.c.b16 %v505, %v503
        %602 = vmatprep.subr.bf16.mxu0 %v521
        %603 = vmatpush1.bf16.msra.mxu0 %v520
        %604 = vmatprep.subr.bf16.mxu0 %v519
        %605 = vmatpush1.bf16.msra.mxu0 %v518
        %606 = vmatprep.subr.bf16.mxu0 %v517
        %607 = vmatpush1.bf16.msra.mxu0 %v516
        %608 = vmatprep.subr.bf16.mxu0 %v515
        %609 = vmatpush1.bf16.msra.mxu0 %v514
        %610 = vmatprep.subr.bf16.mxu0 %v513
        %611 = vmatpush1.bf16.msra.mxu0 %v512
        %612 = vmatprep.subr.bf16.mxu0 %v511
        %613 = vmatpush1.bf16.msra.mxu0 %v510
        %614 = vmatprep.subr.bf16.mxu0 %v509
        %615 = vmatpush1.bf16.msra.mxu0 %v508
        %616 = vmatprep.subr.bf16.mxu0 %v507
        %617 = vmatpush1.bf16.msra.mxu0 %v506
        %618 = vmatprep.subr.bf16.mxu0 %v537
        %619 = vmatpush2.bf16.msra.mxu0 %v536
        %620 = vmatprep.subr.bf16.mxu0 %v535
        %621 = vmatpush2.bf16.msra.mxu0 %v534
        %622 = vmatprep.subr.bf16.mxu0 %v533
        %623 = vmatpush2.bf16.msra.mxu0 %v532
        %624 = vmatprep.subr.bf16.mxu0 %v531
        %625 = vmatpush2.bf16.msra.mxu0 %v530
        %626 = vmatprep.subr.bf16.mxu0 %v529
        %627 = vmatpush2.bf16.msra.mxu0 %v528
        %628 = vmatprep.subr.bf16.mxu0 %v527
        %629 = vmatpush2.bf16.msra.mxu0 %v526
        %630 = vmatprep.subr.bf16.mxu0 %v525
        %631 = vmatpush2.bf16.msra.mxu0 %v524
        %632 = vmatprep.subr.bf16.mxu0 %v523
        %633 = vmatpush2.bf16.msra.mxu0 %v522
        %634 = vmatprep.mubr.bf16.mxu0 %v267
        %635 = vmatmul.mubr.bf16.gmra.mxu0 %v266
        %v636 = vpop.f32.mrf.mxu0
        %v637 = vadd.f32 0.0, %v636
        %v638 = vpop.f32.mrf.mxu0
        %v639 = vadd.f32 0.0, %v638
        %v640 = vpop.f32.mrf.mxu0
        %v641 = vadd.f32 0.0, %v640
        %v642 = vpop.f32.mrf.mxu0
        %v643 = vadd.f32 0.0, %v642
        %644 = vmatprep.mubr.bf16.mxu0 %v270
        %645 = vmatmul.mubr.bf16.gmra.mxu0 %v269
        %v646 = vpop.f32.mrf.mxu0
        %v647 = vadd.f32 0.0, %v646
        %v648 = vpop.f32.mrf.mxu0
        %v649 = vadd.f32 0.0, %v648
        %v650 = vpop.f32.mrf.mxu0
        %v651 = vadd.f32 0.0, %v650
        %v652 = vpop.f32.mrf.mxu0
        %v653 = vadd.f32 0.0, %v652
        %654 = vmatprep.mubr.bf16.mxu0 %v273
        %655 = vmatmul.mubr.bf16.gmra.mxu0 %v272
        %v656 = vpop.f32.mrf.mxu0
        %v657 = vadd.f32 0.0, %v656
        %v658 = vpop.f32.mrf.mxu0
        %v659 = vadd.f32 0.0, %v658
        %v660 = vpop.f32.mrf.mxu0
        %v661 = vadd.f32 0.0, %v660
        %v662 = vpop.f32.mrf.mxu0
        %v663 = vadd.f32 0.0, %v662
        %664 = vmatprep.mubr.bf16.mxu0 %v276
        %665 = vmatmul.mubr.bf16.gmra.mxu0 %v275
        %v666 = vpop.f32.mrf.mxu0
        %v667 = vadd.f32 0.0, %v666
        %v668 = vpop.f32.mrf.mxu0
        %v669 = vadd.f32 0.0, %v668
        %v670 = vpop.f32.mrf.mxu0
        %v671 = vadd.f32 0.0, %v670
        %v672 = vpop.f32.mrf.mxu0
        %v673 = vadd.f32 0.0, %v672
        %674 = vmatprep.mubr.bf16.mxu0 %v279
        %675 = vmatmul.mubr.bf16.gmra.mxu0 %v278
        %v676 = vpop.f32.mrf.mxu0
        %v677 = vadd.f32 0.0, %v676
        %v678 = vpop.f32.mrf.mxu0
        %v679 = vadd.f32 0.0, %v678
        %v680 = vpop.f32.mrf.mxu0
        %v681 = vadd.f32 0.0, %v680
        %v682 = vpop.f32.mrf.mxu0
        %v683 = vadd.f32 0.0, %v682
        %684 = vmatprep.mubr.bf16.mxu0 %v282
        %685 = vmatmul.mubr.bf16.gmra.mxu0 %v281
        %v686 = vpop.f32.mrf.mxu0
        %v687 = vadd.f32 0.0, %v686
        %v688 = vpop.f32.mrf.mxu0
        %v689 = vadd.f32 0.0, %v688
        %v690 = vpop.f32.mrf.mxu0
        %v691 = vadd.f32 0.0, %v690
        %v692 = vpop.f32.mrf.mxu0
        %v693 = vadd.f32 0.0, %v692
        %694 = vmatprep.mubr.bf16.mxu0 %v285
        %695 = vmatmul.mubr.bf16.gmra.mxu0 %v284
        %v696 = vpop.f32.mrf.mxu0
        %v697 = vadd.f32 0.0, %v696
        %v698 = vpop.f32.mrf.mxu0
        %v699 = vadd.f32 0.0, %v698
        %v700 = vpop.f32.mrf.mxu0
        %v701 = vadd.f32 0.0, %v700
        %v702 = vpop.f32.mrf.mxu0
        %v703 = vadd.f32 0.0, %v702
        %704 = vmatprep.mubr.bf16.mxu0 %v288
        %705 = vmatmul.mubr.bf16.gmra.mxu0 %v287
        %v706 = vpop.f32.mrf.mxu0
        %v707 = vadd.f32 0.0, %v706
        %v708 = vpop.f32.mrf.mxu0
        %v709 = vadd.f32 0.0, %v708
        %v710 = vpop.f32.mrf.mxu0
        %v711 = vadd.f32 0.0, %v710
        %v712 = vpop.f32.mrf.mxu0
        %v713 = vadd.f32 0.0, %v712
        %714 = vmatprep.mubr.bf16.mxu0 %v291
        %715 = vmatmul.mubr.bf16.gmra.mxu0 %v290
        %v716 = vpop.f32.mrf.mxu0
        %v717 = vadd.f32 0.0, %v716
        %v718 = vpop.f32.mrf.mxu0
        %v719 = vadd.f32 0.0, %v718
        %v720 = vpop.f32.mrf.mxu0
        %v721 = vadd.f32 0.0, %v720
        %v722 = vpop.f32.mrf.mxu0
        %v723 = vadd.f32 0.0, %v722
        %724 = vmatprep.mubr.bf16.mxu0 %v294
        %725 = vmatmul.mubr.bf16.gmra.mxu0 %v293
        %v726 = vpop.f32.mrf.mxu0
        %v727 = vadd.f32 0.0, %v726
        %v728 = vpop.f32.mrf.mxu0
        %v729 = vadd.f32 0.0, %v728
        %v730 = vpop.f32.mrf.mxu0
        %v731 = vadd.f32 0.0, %v730
        %v732 = vpop.f32.mrf.mxu0
        %v733 = vadd.f32 0.0, %v732
        %734 = vmatprep.mubr.bf16.mxu0 %v297
        %735 = vmatmul.mubr.bf16.gmra.mxu0 %v296
        %v736 = vpop.f32.mrf.mxu0
        %v737 = vadd.f32 0.0, %v736
        %v738 = vpop.f32.mrf.mxu0
        %v739 = vadd.f32 0.0, %v738
        %v740 = vpop.f32.mrf.mxu0
        %v741 = vadd.f32 0.0, %v740
        %v742 = vpop.f32.mrf.mxu0
        %v743 = vadd.f32 0.0, %v742
        %744 = vmatprep.mubr.bf16.mxu0 %v300
        %745 = vmatmul.mubr.bf16.gmra.mxu0 %v299
        %v746 = vpop.f32.mrf.mxu0
        %v747 = vadd.f32 0.0, %v746
        %v748 = vpop.f32.mrf.mxu0
        %v749 = vadd.f32 0.0, %v748
        %v750 = vpop.f32.mrf.mxu0
        %v751 = vadd.f32 0.0, %v750
        %v752 = vpop.f32.mrf.mxu0
        %v753 = vadd.f32 0.0, %v752
        %754 = vmatprep.mubr.bf16.mxu0 %v303
        %755 = vmatmul.mubr.bf16.gmra.mxu0 %v302
        %v756 = vpop.f32.mrf.mxu0
        %v757 = vadd.f32 0.0, %v756
        %v758 = vpop.f32.mrf.mxu0
        %v759 = vadd.f32 0.0, %v758
        %v760 = vpop.f32.mrf.mxu0
        %v761 = vadd.f32 0.0, %v760
        %v762 = vpop.f32.mrf.mxu0
        %v763 = vadd.f32 0.0, %v762
        %764 = vmatprep.mubr.bf16.mxu0 %v306
        %765 = vmatmul.mubr.bf16.gmra.mxu0 %v305
        %v766 = vpop.f32.mrf.mxu0
        %v767 = vadd.f32 0.0, %v766
        %v768 = vpop.f32.mrf.mxu0
        %v769 = vadd.f32 0.0, %v768
        %v770 = vpop.f32.mrf.mxu0
        %v771 = vadd.f32 0.0, %v770
        %v772 = vpop.f32.mrf.mxu0
        %v773 = vadd.f32 0.0, %v772
        %774 = vmatprep.mubr.bf16.mxu0 %v309
        %775 = vmatmul.mubr.bf16.gmra.mxu0 %v308
        %v776 = vpop.f32.mrf.mxu0
        %v777 = vadd.f32 0.0, %v776
        %v778 = vpop.f32.mrf.mxu0
        %v779 = vadd.f32 0.0, %v778
        %v780 = vpop.f32.mrf.mxu0
        %v781 = vadd.f32 0.0, %v780
        %v782 = vpop.f32.mrf.mxu0
        %v783 = vadd.f32 0.0, %v782
        %784 = vmatprep.mubr.bf16.mxu0 %v312
        %785 = vmatmul.mubr.bf16.gmra.mxu0 %v311
        %v786 = vpop.f32.mrf.mxu0
        %v787 = vadd.f32 0.0, %v786
        %v788 = vpop.f32.mrf.mxu0
        %v789 = vadd.f32 0.0, %v788
        %v790 = vpop.f32.mrf.mxu0
        %v791 = vadd.f32 0.0, %v790
        %v792 = vpop.f32.mrf.mxu0
        %v793 = vadd.f32 0.0, %v792
        %794 = vdwg.mxu0
        %795 = vmatprep.subr.bf16.mxu0 %v553
        %796 = vmatpush1.bf16.msra.mxu0 %v552
        %797 = vmatprep.subr.bf16.mxu0 %v551
        %798 = vmatpush1.bf16.msra.mxu0 %v550
        %799 = vmatprep.subr.bf16.mxu0 %v549
        %800 = vmatpush1.bf16.msra.mxu0 %v548
        %801 = vmatprep.subr.bf16.mxu0 %v547
        %802 = vmatpush1.bf16.msra.mxu0 %v546
        %803 = vmatprep.subr.bf16.mxu0 %v545
        %804 = vmatpush1.bf16.msra.mxu0 %v544
        %805 = vmatprep.subr.bf16.mxu0 %v543
        %806 = vmatpush1.bf16.msra.mxu0 %v542
        %807 = vmatprep.subr.bf16.mxu0 %v541
        %808 = vmatpush1.bf16.msra.mxu0 %v540
        %809 = vmatprep.subr.bf16.mxu0 %v539
        %810 = vmatpush1.bf16.msra.mxu0 %v538
        %811 = vmatprep.subr.bf16.mxu0 0
        %812 = vmatpush2.bf16.msra.mxu0 0
        %813 = vmatprep.subr.bf16.mxu0 0
        %814 = vmatpush2.bf16.msra.mxu0 0
        %815 = vmatprep.subr.bf16.mxu0 0
        %816 = vmatpush2.bf16.msra.mxu0 0
        %817 = vmatprep.subr.bf16.mxu0 0
        %818 = vmatpush2.bf16.msra.mxu0 0
        %819 = vmatprep.subr.bf16.mxu0 0
        %820 = vmatpush2.bf16.msra.mxu0 0
        %821 = vmatprep.subr.bf16.mxu0 0
        %822 = vmatpush2.bf16.msra.mxu0 0
        %823 = vmatprep.subr.bf16.mxu0 0
        %824 = vmatpush2.bf16.msra.mxu0 0
        %825 = vmatprep.subr.bf16.mxu0 0
        %826 = vmatpush2.bf16.msra.mxu0 0
        %827 = vmatprep.mubr.bf16.mxu0 0
        %828 = vmatmul.mubr.bf16.gmra.mxu0 %v268
        %v829 = vpop.f32.mrf.mxu0
        %v830 = vadd.f32 %v637, %v829
        %v831 = vpop.f32.mrf.mxu0
        %v832 = vadd.f32 %v639, %v831
        %v833 = vpop.f32.mrf.mxu0
        %v834 = vadd.f32 %v641, %v833
        %v835 = vpop.f32.mrf.mxu0
        %v836 = vadd.f32 %v643, %v835
        %837 = vmatprep.mubr.bf16.mxu0 0
        %838 = vmatmul.mubr.bf16.gmra.mxu0 %v271
        %v839 = vpop.f32.mrf.mxu0
        %v840 = vadd.f32 %v647, %v839
        %v841 = vpop.f32.mrf.mxu0
        %v842 = vadd.f32 %v649, %v841
        %v843 = vpop.f32.mrf.mxu0
        %v844 = vadd.f32 %v651, %v843
        %v845 = vpop.f32.mrf.mxu0
        %v846 = vadd.f32 %v653, %v845
        %847 = vmatprep.mubr.bf16.mxu0 0
        %848 = vmatmul.mubr.bf16.gmra.mxu0 %v274
        %v849 = vpop.f32.mrf.mxu0
        %v850 = vadd.f32 %v657, %v849
        %v851 = vpop.f32.mrf.mxu0
        %v852 = vadd.f32 %v659, %v851
        %v853 = vpop.f32.mrf.mxu0
        %v854 = vadd.f32 %v661, %v853
        %v855 = vpop.f32.mrf.mxu0
        %v856 = vadd.f32 %v663, %v855
        %857 = vmatprep.mubr.bf16.mxu0 0
        %858 = vmatmul.mubr.bf16.gmra.mxu0 %v277
        %v859 = vpop.f32.mrf.mxu0
        %v860 = vadd.f32 %v667, %v859
        %v861 = vpop.f32.mrf.mxu0
        %v862 = vadd.f32 %v669, %v861
        %v863 = vpop.f32.mrf.mxu0
        %v864 = vadd.f32 %v671, %v863
        %v865 = vpop.f32.mrf.mxu0
        %v866 = vadd.f32 %v673, %v865
        %867 = vmatprep.mubr.bf16.mxu0 0
        %868 = vmatmul.mubr.bf16.gmra.mxu0 %v280
        %v869 = vpop.f32.mrf.mxu0
        %v870 = vadd.f32 %v677, %v869
        %v871 = vpop.f32.mrf.mxu0
        %v872 = vadd.f32 %v679, %v871
        %v873 = vpop.f32.mrf.mxu0
        %v874 = vadd.f32 %v681, %v873
        %v875 = vpop.f32.mrf.mxu0
        %v876 = vadd.f32 %v683, %v875
        %877 = vmatprep.mubr.bf16.mxu0 0
        %878 = vmatmul.mubr.bf16.gmra.mxu0 %v283
        %v879 = vpop.f32.mrf.mxu0
        %v880 = vadd.f32 %v687, %v879
        %v881 = vpop.f32.mrf.mxu0
        %v882 = vadd.f32 %v689, %v881
        %v883 = vpop.f32.mrf.mxu0
        %v884 = vadd.f32 %v691, %v883
        %v885 = vpop.f32.mrf.mxu0
        %v886 = vadd.f32 %v693, %v885
        %887 = vmatprep.mubr.bf16.mxu0 0
        %888 = vmatmul.mubr.bf16.gmra.mxu0 %v286
        %v889 = vpop.f32.mrf.mxu0
        %v890 = vadd.f32 %v697, %v889
        %v891 = vpop.f32.mrf.mxu0
        %v892 = vadd.f32 %v699, %v891
        %v893 = vpop.f32.mrf.mxu0
        %v894 = vadd.f32 %v701, %v893
        %v895 = vpop.f32.mrf.mxu0
        %v896 = vadd.f32 %v703, %v895
        %897 = vmatprep.mubr.bf16.mxu0 0
        %898 = vmatmul.mubr.bf16.gmra.mxu0 %v289
        %v899 = vpop.f32.mrf.mxu0
        %v900 = vadd.f32 %v707, %v899
        %v901 = vpop.f32.mrf.mxu0
        %v902 = vadd.f32 %v709, %v901
        %v903 = vpop.f32.mrf.mxu0
        %v904 = vadd.f32 %v711, %v903
        %v905 = vpop.f32.mrf.mxu0
        %v906 = vadd.f32 %v713, %v905
        %907 = vmatprep.mubr.bf16.mxu0 0
        %908 = vmatmul.mubr.bf16.gmra.mxu0 %v292
        %v909 = vpop.f32.mrf.mxu0
        %v910 = vadd.f32 %v717, %v909
        %v911 = vpop.f32.mrf.mxu0
        %v912 = vadd.f32 %v719, %v911
        %v913 = vpop.f32.mrf.mxu0
        %v914 = vadd.f32 %v721, %v913
        %v915 = vpop.f32.mrf.mxu0
        %v916 = vadd.f32 %v723, %v915
        %917 = vmatprep.mubr.bf16.mxu0 0
        %918 = vmatmul.mubr.bf16.gmra.mxu0 %v295
        %v919 = vpop.f32.mrf.mxu0
        %v920 = vadd.f32 %v727, %v919
        %v921 = vpop.f32.mrf.mxu0
        %v922 = vadd.f32 %v729, %v921
        %v923 = vpop.f32.mrf.mxu0
        %v924 = vadd.f32 %v731, %v923
        %v925 = vpop.f32.mrf.mxu0
        %v926 = vadd.f32 %v733, %v925
        %927 = vmatprep.mubr.bf16.mxu0 0
        %928 = vmatmul.mubr.bf16.gmra.mxu0 %v298
        %v929 = vpop.f32.mrf.mxu0
        %v930 = vadd.f32 %v737, %v929
        %v931 = vpop.f32.mrf.mxu0
        %v932 = vadd.f32 %v739, %v931
        %v933 = vpop.f32.mrf.mxu0
        %v934 = vadd.f32 %v741, %v933
        %v935 = vpop.f32.mrf.mxu0
        %v936 = vadd.f32 %v743, %v935
        %937 = vmatprep.mubr.bf16.mxu0 0
        %938 = vmatmul.mubr.bf16.gmra.mxu0 %v301
        %v939 = vpop.f32.mrf.mxu0
        %v940 = vadd.f32 %v747, %v939
        %v941 = vpop.f32.mrf.mxu0
        %v942 = vadd.f32 %v749, %v941
        %v943 = vpop.f32.mrf.mxu0
        %v944 = vadd.f32 %v751, %v943
        %v945 = vpop.f32.mrf.mxu0
        %v946 = vadd.f32 %v753, %v945
        %947 = vmatprep.mubr.bf16.mxu0 0
        %948 = vmatmul.mubr.bf16.gmra.mxu0 %v304
        %v949 = vpop.f32.mrf.mxu0
        %v950 = vadd.f32 %v757, %v949
        %v951 = vpop.f32.mrf.mxu0
        %v952 = vadd.f32 %v759, %v951
        %v953 = vpop.f32.mrf.mxu0
        %v954 = vadd.f32 %v761, %v953
        %v955 = vpop.f32.mrf.mxu0
        %v956 = vadd.f32 %v763, %v955
        %957 = vmatprep.mubr.bf16.mxu0 0
        %958 = vmatmul.mubr.bf16.gmra.mxu0 %v307
        %v959 = vpop.f32.mrf.mxu0
        %v960 = vadd.f32 %v767, %v959
        %v961 = vpop.f32.mrf.mxu0
        %v962 = vadd.f32 %v769, %v961
        %v963 = vpop.f32.mrf.mxu0
        %v964 = vadd.f32 %v771, %v963
        %v965 = vpop.f32.mrf.mxu0
        %v966 = vadd.f32 %v773, %v965
        %967 = vmatprep.mubr.bf16.mxu0 0
        %968 = vmatmul.mubr.bf16.gmra.mxu0 %v310
        %v969 = vpop.f32.mrf.mxu0
        %v970 = vadd.f32 %v777, %v969
        %v971 = vpop.f32.mrf.mxu0
        %v972 = vadd.f32 %v779, %v971
        %v973 = vpop.f32.mrf.mxu0
        %v974 = vadd.f32 %v781, %v973
        %v975 = vpop.f32.mrf.mxu0
        %v976 = vadd.f32 %v783, %v975
        %977 = vmatprep.mubr.bf16.mxu0 0
        %978 = vmatmul.mubr.bf16.gmra.mxu0 %v313
        %v979 = vpop.f32.mrf.mxu0
        %v980 = vadd.f32 %v787, %v979
        %v981 = vpop.f32.mrf.mxu0
        %v982 = vadd.f32 %v789, %v981
        %v983 = vpop.f32.mrf.mxu0
        %v984 = vadd.f32 %v791, %v983
        %v985 = vpop.f32.mrf.mxu0
        %v986 = vadd.f32 %v793, %v985
        %987 = vdwg.mxu0
        %v988 = vlaneseq
        %v989 = vshrl.u32 %v988, 7
        %v990 = vadd.s32 %v989, 8
        %v991 = vadd.s32 %v989, 16
        %v992 = vadd.s32 %v989, 24
        %v993 = vadd.s32 %v989, 32
        %v994 = vadd.s32 %v989, 40
        %v995 = vadd.s32 %v989, 48
        %v996 = vadd.s32 %v989, 56
        %v997 = vadd.s32 %v989, 64
        %v998 = vadd.s32 %v989, 72
        %v999 = vadd.s32 %v989, 80
        %v1000 = vadd.s32 %v989, 88
        %v1001 = vadd.s32 %v989, 96
        %v1002 = vadd.s32 %v989, 104
        %v1003 = vadd.s32 %v989, 112
        %v1004 = vadd.s32 %v989, 120
        %v1005 = vlaneseq
        %v1006 = vand.u32 %v1005, 127
        %vm1007 = vcmp.le.s32.totalorder %v1006, %v989
        %vm1008 = vcmp.le.s32.totalorder %v1006, %v990
        %vm1009 = vcmp.le.s32.totalorder %v1006, %v991
        %vm1010 = vcmp.le.s32.totalorder %v1006, %v992
        %vm1011 = vcmp.le.s32.totalorder %v1006, %v993
        %vm1012 = vcmp.le.s32.totalorder %v1006, %v994
        %vm1013 = vcmp.le.s32.totalorder %v1006, %v995
        %vm1014 = vcmp.le.s32.totalorder %v1006, %v996
        %vm1015 = vcmp.le.s32.totalorder %v1006, %v997
        %vm1016 = vcmp.le.s32.totalorder %v1006, %v998
        %vm1017 = vcmp.le.s32.totalorder %v1006, %v999
        %vm1018 = vcmp.le.s32.totalorder %v1006, %v1000
        %vm1019 = vcmp.le.s32.totalorder %v1006, %v1001
        %vm1020 = vcmp.le.s32.totalorder %v1006, %v1002
        %vm1021 = vcmp.le.s32.totalorder %v1006, %v1003
        %vm1022 = vcmp.le.s32.totalorder %v1006, %v1004
        %v1023 = vpack.c.bf16 %v834, %v830
        %v1024 = vpack.c.bf16 %v844, %v840
        %v1025 = vpack.c.bf16 %v854, %v850
        %v1026 = vpack.c.bf16 %v864, %v860
        %v1027 = vpack.c.bf16 %v874, %v870
        %v1028 = vpack.c.bf16 %v884, %v880
        %v1029 = vpack.c.bf16 %v894, %v890
        %v1030 = vpack.c.bf16 %v904, %v900
        %v1031 = vpack.c.bf16 %v836, %v832
        %v1032 = vpack.c.bf16 %v846, %v842
        %v1033 = vpack.c.bf16 %v856, %v852
        %v1034 = vpack.c.bf16 %v866, %v862
        %v1035 = vpack.c.bf16 %v876, %v872
        %v1036 = vpack.c.bf16 %v886, %v882
        %v1037 = vpack.c.bf16 %v896, %v892
        %v1038 = vpack.c.bf16 %v906, %v902
        %1047 = vrot.lane.b32.xlu0 %v1023, 64
        %v1048 = vpop.permute.xlu0 %1047
        %1049 = vrot.lane.b32.xlu0 %v1024, 64
        %v1050 = vpop.permute.xlu0 %1049
        %1051 = vrot.lane.b32.xlu0 %v1025, 64
        %v1052 = vpop.permute.xlu0 %1051
        %1053 = vrot.lane.b32.xlu0 %v1026, 64
        %v1054 = vpop.permute.xlu0 %1053
        %1055 = vrot.lane.b32.xlu0 %v1027, 64
        %v1056 = vpop.permute.xlu0 %1055
        %1057 = vrot.lane.b32.xlu0 %v1028, 64
        %v1058 = vpop.permute.xlu0 %1057
        %1059 = vrot.lane.b32.xlu0 %v1029, 64
        %v1060 = vpop.permute.xlu0 %1059
        %1061 = vrot.lane.b32.xlu0 %v1030, 64
        %v1062 = vpop.permute.xlu0 %1061
        %vm1063 = vcmask 523264
        %v1065 = vsel %vm1063, %v1023, 0
        %v1068 = vsel %vm1063, %v1024, 0
        %v1071 = vsel %vm1063, %v1025, 0
        %v1074 = vsel %vm1063, %v1026, 0
        %v1077 = vsel %vm1063, %v1027, 0
        %v1080 = vsel %vm1063, %v1028, 0
        %v1083 = vsel %vm1063, %v1029, 0
        %v1086 = vsel %vm1063, %v1030, 0
        %v1089 = vsel %vm1063, %v1048, 0
        %v1092 = vsel %vm1063, %v1050, 0
        %v1095 = vsel %vm1063, %v1052, 0
        %v1098 = vsel %vm1063, %v1054, 0
        %v1101 = vsel %vm1063, %v1056, 0
        %v1104 = vsel %vm1063, %v1058, 0
        %v1107 = vsel %vm1063, %v1060, 0
        %v1110 = vsel %vm1063, %v1062, 0
        %1112 = vmatprep.subr.bf16.mxu0 0
        %1113 = vmatpush1.bf16.xpose.msra.mxu0 %v1110
        %1114 = vmatprep.subr.bf16.mxu0 0
        %1115 = vmatpush1.bf16.xpose.msra.mxu0 %v1107
        %1116 = vmatprep.subr.bf16.mxu0 0
        %1117 = vmatpush1.bf16.xpose.msra.mxu0 %v1104
        %1118 = vmatprep.subr.bf16.mxu0 0
        %1119 = vmatpush1.bf16.xpose.msra.mxu0 %v1101
        %1120 = vmatprep.subr.bf16.mxu0 0
        %1121 = vmatpush1.bf16.xpose.msra.mxu0 %v1098
        %1122 = vmatprep.subr.bf16.mxu0 0
        %1123 = vmatpush1.bf16.xpose.msra.mxu0 %v1095
        %1124 = vmatprep.subr.bf16.mxu0 0
        %1125 = vmatpush1.bf16.xpose.msra.mxu0 %v1092
        %1126 = vmatprep.subr.bf16.mxu0 0
        %1127 = vmatpush1.bf16.xpose.msra.mxu0 %v1089
        %1128 = vmatprep.subr.bf16.mxu0 0
        %1129 = vmatpush2.bf16.xpose.msra.mxu0 0
        %1130 = vmatprep.subr.bf16.mxu0 0
        %1131 = vmatpush2.bf16.xpose.msra.mxu0 0
        %1132 = vmatprep.subr.bf16.mxu0 0
        %1133 = vmatpush2.bf16.xpose.msra.mxu0 0
        %1134 = vmatprep.subr.bf16.mxu0 0
        %1135 = vmatpush2.bf16.xpose.msra.mxu0 0
        %1136 = vmatprep.subr.bf16.mxu0 0
        %1137 = vmatpush2.bf16.xpose.msra.mxu0 0
        %1138 = vmatprep.subr.bf16.mxu0 0
        %1139 = vmatpush2.bf16.xpose.msra.mxu0 0
        %1140 = vmatprep.subr.bf16.mxu0 0
        %1141 = vmatpush2.bf16.xpose.msra.mxu0 0
        %1142 = vmatprep.subr.bf16.mxu0 0
        %1143 = vmatpush2.bf16.xpose.msra.mxu0 0
        %1144 = vmatprep.mubr.bf16.mxu0 0
        %1145 = vmatmul.mubr.bf16.gmra.mxu0 %v1065
        %v1146 = vpop.f32.mrf.mxu0
        %v1147 = vadd.f32 0.0, %v1146
        %v1148 = vpop.f32.mrf.mxu0
        %v1149 = vpop.f32.mrf.mxu0
        %v1150 = vadd.f32 0.0, %v1149
        %v1151 = vpop.f32.mrf.mxu0
        %1152 = vmatprep.mubr.bf16.mxu0 0
        %1153 = vmatmul.mubr.bf16.gmra.mxu0 %v1068
        %v1154 = vpop.f32.mrf.mxu0
        %v1155 = vadd.f32 0.0, %v1154
        %v1156 = vpop.f32.mrf.mxu0
        %v1157 = vpop.f32.mrf.mxu0
        %v1158 = vadd.f32 0.0, %v1157
        %v1159 = vpop.f32.mrf.mxu0
        %1160 = vmatprep.mubr.bf16.mxu0 0
        %1161 = vmatmul.mubr.bf16.gmra.mxu0 %v1071
        %v1162 = vpop.f32.mrf.mxu0
        %v1163 = vadd.f32 0.0, %v1162
        %v1164 = vpop.f32.mrf.mxu0
        %v1165 = vpop.f32.mrf.mxu0
        %v1166 = vadd.f32 0.0, %v1165
        %v1167 = vpop.f32.mrf.mxu0
        %1168 = vmatprep.mubr.bf16.mxu0 0
        %1169 = vmatmul.mubr.bf16.gmra.mxu0 %v1074
        %v1170 = vpop.f32.mrf.mxu0
        %v1171 = vadd.f32 0.0, %v1170
        %v1172 = vpop.f32.mrf.mxu0
        %v1173 = vpop.f32.mrf.mxu0
        %v1174 = vadd.f32 0.0, %v1173
        %v1175 = vpop.f32.mrf.mxu0
        %1176 = vmatprep.mubr.bf16.mxu0 0
        %1177 = vmatmul.mubr.bf16.gmra.mxu0 %v1077
        %v1178 = vpop.f32.mrf.mxu0
        %v1179 = vadd.f32 0.0, %v1178
        %v1180 = vpop.f32.mrf.mxu0
        %v1181 = vpop.f32.mrf.mxu0
        %v1182 = vadd.f32 0.0, %v1181
        %v1183 = vpop.f32.mrf.mxu0
        %1184 = vmatprep.mubr.bf16.mxu0 0
        %1185 = vmatmul.mubr.bf16.gmra.mxu0 %v1080
        %v1186 = vpop.f32.mrf.mxu0
        %v1187 = vadd.f32 0.0, %v1186
        %v1188 = vpop.f32.mrf.mxu0
        %v1189 = vpop.f32.mrf.mxu0
        %v1190 = vadd.f32 0.0, %v1189
        %v1191 = vpop.f32.mrf.mxu0
        %1192 = vmatprep.mubr.bf16.mxu0 0
        %1193 = vmatmul.mubr.bf16.gmra.mxu0 %v1083
        %v1194 = vpop.f32.mrf.mxu0
        %v1195 = vadd.f32 0.0, %v1194
        %v1196 = vpop.f32.mrf.mxu0
        %v1197 = vpop.f32.mrf.mxu0
        %v1198 = vadd.f32 0.0, %v1197
        %v1199 = vpop.f32.mrf.mxu0
        %1200 = vmatprep.mubr.bf16.mxu0 0
        %1201 = vmatmul.mubr.bf16.gmra.mxu0 %v1086
        %v1202 = vpop.f32.mrf.mxu0
        %v1203 = vadd.f32 0.0, %v1202
        %v1204 = vpop.f32.mrf.mxu0
        %v1205 = vpop.f32.mrf.mxu0
        %v1206 = vadd.f32 0.0, %v1205
        %v1207 = vpop.f32.mrf.mxu0
        %1208 = vdwg.mxu0
        %v1209 = vsel %vm1007, %v1147, -1e+30
        %v1210 = vsel %vm1008, %v1150, -1e+30
        %v1211 = vsel %vm1009, %v1155, -1e+30
        %v1212 = vsel %vm1010, %v1158, -1e+30
        %v1213 = vsel %vm1011, %v1163, -1e+30
        %v1214 = vsel %vm1012, %v1166, -1e+30
        %v1215 = vsel %vm1013, %v1171, -1e+30
        %v1216 = vsel %vm1014, %v1174, -1e+30
        %v1217 = vsel %vm1015, %v1179, -1e+30
        %v1218 = vsel %vm1016, %v1182, -1e+30
        %v1219 = vsel %vm1017, %v1187, -1e+30
        %v1220 = vsel %vm1018, %v1190, -1e+30
        %v1221 = vsel %vm1019, %v1195, -1e+30
        %v1222 = vsel %vm1020, %v1198, -1e+30
        %v1223 = vsel %vm1021, %v1203, -1e+30
        %v1224 = vsel %vm1022, %v1206, -1e+30
        %1225 = vmax.xlane.f32.xlu0 %v1209
        %v1226 = vpop.xlane.xlu0 %1225
        %1227 = vmax.xlane.f32.xlu0 %v1210
        %v1228 = vpop.xlane.xlu0 %1227
        %1229 = vmax.xlane.f32.xlu0 %v1211
        %v1230 = vpop.xlane.xlu0 %1229
        %1231 = vmax.xlane.f32.xlu0 %v1212
        %v1232 = vpop.xlane.xlu0 %1231
        %1233 = vmax.xlane.f32.xlu0 %v1213
        %v1234 = vpop.xlane.xlu0 %1233
        %1235 = vmax.xlane.f32.xlu0 %v1214
        %v1236 = vpop.xlane.xlu0 %1235
        %1237 = vmax.xlane.f32.xlu0 %v1215
        %v1238 = vpop.xlane.xlu0 %1237
        %1239 = vmax.xlane.f32.xlu0 %v1216
        %v1240 = vpop.xlane.xlu0 %1239
        %1241 = vmax.xlane.f32.xlu0 %v1217
        %v1242 = vpop.xlane.xlu0 %1241
        %1243 = vmax.xlane.f32.xlu0 %v1218
        %v1244 = vpop.xlane.xlu0 %1243
        %1245 = vmax.xlane.f32.xlu0 %v1219
        %v1246 = vpop.xlane.xlu0 %1245
        %1247 = vmax.xlane.f32.xlu0 %v1220
        %v1248 = vpop.xlane.xlu0 %1247
        %1249 = vmax.xlane.f32.xlu0 %v1221
        %v1250 = vpop.xlane.xlu0 %1249
        %1251 = vmax.xlane.f32.xlu0 %v1222
        %v1252 = vpop.xlane.xlu0 %1251
        %1253 = vmax.xlane.f32.xlu0 %v1223
        %v1254 = vpop.xlane.xlu0 %1253
        %1255 = vmax.xlane.f32.xlu0 %v1224
        %v1256 = vpop.xlane.xlu0 %1255
        %v1257 = vsub.f32 %v1209, %v1226
        %v1258 = vsub.f32 %v1210, %v1228
        %v1259 = vsub.f32 %v1211, %v1230
        %v1260 = vsub.f32 %v1212, %v1232
        %v1261 = vsub.f32 %v1213, %v1234
        %v1262 = vsub.f32 %v1214, %v1236
        %v1263 = vsub.f32 %v1215, %v1238
        %v1264 = vsub.f32 %v1216, %v1240
        %v1265 = vsub.f32 %v1217, %v1242
        %v1266 = vsub.f32 %v1218, %v1244
        %v1267 = vsub.f32 %v1219, %v1246
        %v1268 = vsub.f32 %v1220, %v1248
        %v1269 = vsub.f32 %v1221, %v1250
        %v1270 = vsub.f32 %v1222, %v1252
        %v1271 = vsub.f32 %v1223, %v1254
        %v1272 = vsub.f32 %v1224, %v1256
        %v1273 = vmul.f32 %v1257, 1.442695
        %v1274 = vpow.pop %v1273
        %v1275 = vmul.f32 %v1258, 1.442695
        %v1276 = vpow.pop %v1275
        %v1277 = vmul.f32 %v1259, 1.442695
        %v1278 = vpow.pop %v1277
        %v1279 = vmul.f32 %v1260, 1.442695
        %v1280 = vpow.pop %v1279
        %v1281 = vmul.f32 %v1261, 1.442695
        %v1282 = vpow.pop %v1281
        %v1283 = vmul.f32 %v1262, 1.442695
        %v1284 = vpow.pop %v1283
        %v1285 = vmul.f32 %v1263, 1.442695
        %v1286 = vpow.pop %v1285
        %v1287 = vmul.f32 %v1264, 1.442695
        %v1288 = vpow.pop %v1287
        %v1289 = vmul.f32 %v1265, 1.442695
        %v1290 = vpow.pop %v1289
        %v1291 = vmul.f32 %v1266, 1.442695
        %v1292 = vpow.pop %v1291
        %v1293 = vmul.f32 %v1267, 1.442695
        %v1294 = vpow.pop %v1293
        %v1295 = vmul.f32 %v1268, 1.442695
        %v1296 = vpow.pop %v1295
        %v1297 = vmul.f32 %v1269, 1.442695
        %v1298 = vpow.pop %v1297
        %v1299 = vmul.f32 %v1270, 1.442695
        %v1300 = vpow.pop %v1299
        %v1301 = vmul.f32 %v1271, 1.442695
        %v1302 = vpow.pop %v1301
        %v1303 = vmul.f32 %v1272, 1.442695
        %v1304 = vpow.pop %v1303
        %1305 = vadd.xlane.f32.xlu0 %v1274
        %v1306 = vpop.xlane.xlu0 %1305
        %1307 = vadd.xlane.f32.xlu0 %v1276
        %v1308 = vpop.xlane.xlu0 %1307
        %1309 = vadd.xlane.f32.xlu0 %v1278
        %v1310 = vpop.xlane.xlu0 %1309
        %1311 = vadd.xlane.f32.xlu0 %v1280
        %v1312 = vpop.xlane.xlu0 %1311
        %1313 = vadd.xlane.f32.xlu0 %v1282
        %v1314 = vpop.xlane.xlu0 %1313
        %1315 = vadd.xlane.f32.xlu0 %v1284
        %v1316 = vpop.xlane.xlu0 %1315
        %1317 = vadd.xlane.f32.xlu0 %v1286
        %v1318 = vpop.xlane.xlu0 %1317
        %1319 = vadd.xlane.f32.xlu0 %v1288
        %v1320 = vpop.xlane.xlu0 %1319
        %1321 = vadd.xlane.f32.xlu0 %v1290
        %v1322 = vpop.xlane.xlu0 %1321
        %1323 = vadd.xlane.f32.xlu0 %v1292
        %v1324 = vpop.xlane.xlu0 %1323
        %1325 = vadd.xlane.f32.xlu0 %v1294
        %v1326 = vpop.xlane.xlu0 %1325
        %1327 = vadd.xlane.f32.xlu0 %v1296
        %v1328 = vpop.xlane.xlu0 %1327
        %1329 = vadd.xlane.f32.xlu0 %v1298
        %v1330 = vpop.xlane.xlu0 %1329
        %1331 = vadd.xlane.f32.xlu0 %v1300
        %v1332 = vpop.xlane.xlu0 %1331
        %1333 = vadd.xlane.f32.xlu0 %v1302
        %v1334 = vpop.xlane.xlu0 %1333
        %1335 = vadd.xlane.f32.xlu0 %v1304
        %v1336 = vpop.xlane.xlu0 %1335
        %v1337 = vpack.c.bf16 %v1276, %v1274
        %v1338 = vpack.c.bf16 %v1280, %v1278
        %v1339 = vpack.c.bf16 %v1284, %v1282
        %v1340 = vpack.c.bf16 %v1288, %v1286
        %v1341 = vpack.c.bf16 %v1292, %v1290
        %v1342 = vpack.c.bf16 %v1296, %v1294
        %v1343 = vpack.c.bf16 %v1300, %v1298
        %v1344 = vpack.c.bf16 %v1304, %v1302
        %1345 = vmatprep.subr.bf16.mxu0 0
        %1346 = vmatpush1.bf16.msra.mxu0 %v1038
        %1347 = vmatprep.subr.bf16.mxu0 0
        %1348 = vmatpush1.bf16.msra.mxu0 %v1037
        %1349 = vmatprep.subr.bf16.mxu0 0
        %1350 = vmatpush1.bf16.msra.mxu0 %v1036
        %1351 = vmatprep.subr.bf16.mxu0 0
        %1352 = vmatpush1.bf16.msra.mxu0 %v1035
        %1353 = vmatprep.subr.bf16.mxu0 0
        %1354 = vmatpush1.bf16.msra.mxu0 %v1034
        %1355 = vmatprep.subr.bf16.mxu0 0
        %1356 = vmatpush1.bf16.msra.mxu0 %v1033
        %1357 = vmatprep.subr.bf16.mxu0 0
        %1358 = vmatpush1.bf16.msra.mxu0 %v1032
        %1359 = vmatprep.subr.bf16.mxu0 0
        %1360 = vmatpush1.bf16.msra.mxu0 %v1031
        %1361 = vmatprep.subr.bf16.mxu0 0
        %1362 = vmatpush2.bf16.msra.mxu0 0
        %1363 = vmatprep.subr.bf16.mxu0 0
        %1364 = vmatpush2.bf16.msra.mxu0 0
        %1365 = vmatprep.subr.bf16.mxu0 0
        %1366 = vmatpush2.bf16.msra.mxu0 0
        %1367 = vmatprep.subr.bf16.mxu0 0
        %1368 = vmatpush2.bf16.msra.mxu0 0
        %1369 = vmatprep.subr.bf16.mxu0 0
        %1370 = vmatpush2.bf16.msra.mxu0 0
        %1371 = vmatprep.subr.bf16.mxu0 0
        %1372 = vmatpush2.bf16.msra.mxu0 0
        %1373 = vmatprep.subr.bf16.mxu0 0
        %1374 = vmatpush2.bf16.msra.mxu0 0
        %1375 = vmatprep.subr.bf16.mxu0 0
        %1376 = vmatpush2.bf16.msra.mxu0 0
        %1377 = vmatprep.mubr.bf16.mxu0 0
        %1378 = vmatmul.mubr.bf16.gmra.mxu0 %v1337
        %v1379 = vpop.f32.mrf.mxu0
        %v1380 = vadd.f32 0.0, %v1379
        %v1381 = vpop.f32.mrf.mxu0
        %v1382 = vpop.f32.mrf.mxu0
        %v1383 = vadd.f32 0.0, %v1382
        %v1384 = vpop.f32.mrf.mxu0
        %1385 = vmatprep.mubr.bf16.mxu0 0
        %1386 = vmatmul.mubr.bf16.gmra.mxu0 %v1338
        %v1387 = vpop.f32.mrf.mxu0
        %v1388 = vadd.f32 0.0, %v1387
        %v1389 = vpop.f32.mrf.mxu0
        %v1390 = vpop.f32.mrf.mxu0
        %v1391 = vadd.f32 0.0, %v1390
        %v1392 = vpop.f32.mrf.mxu0
        %1393 = vmatprep.mubr.bf16.mxu0 0
        %1394 = vmatmul.mubr.bf16.gmra.mxu0 %v1339
        %v1395 = vpop.f32.mrf.mxu0
        %v1396 = vadd.f32 0.0, %v1395
        %v1397 = vpop.f32.mrf.mxu0
        %v1398 = vpop.f32.mrf.mxu0
        %v1399 = vadd.f32 0.0, %v1398
        %v1400 = vpop.f32.mrf.mxu0
        %1401 = vmatprep.mubr.bf16.mxu0 0
        %1402 = vmatmul.mubr.bf16.gmra.mxu0 %v1340
        %v1403 = vpop.f32.mrf.mxu0
        %v1404 = vadd.f32 0.0, %v1403
        %v1405 = vpop.f32.mrf.mxu0
        %v1406 = vpop.f32.mrf.mxu0
        %v1407 = vadd.f32 0.0, %v1406
        %v1408 = vpop.f32.mrf.mxu0
        %1409 = vmatprep.mubr.bf16.mxu0 0
        %1410 = vmatmul.mubr.bf16.gmra.mxu0 %v1341
        %v1411 = vpop.f32.mrf.mxu0
        %v1412 = vadd.f32 0.0, %v1411
        %v1413 = vpop.f32.mrf.mxu0
        %v1414 = vpop.f32.mrf.mxu0
        %v1415 = vadd.f32 0.0, %v1414
        %v1416 = vpop.f32.mrf.mxu0
        %1417 = vmatprep.mubr.bf16.mxu0 0
        %1418 = vmatmul.mubr.bf16.gmra.mxu0 %v1342
        %v1419 = vpop.f32.mrf.mxu0
        %v1420 = vadd.f32 0.0, %v1419
        %v1421 = vpop.f32.mrf.mxu0
        %v1422 = vpop.f32.mrf.mxu0
        %v1423 = vadd.f32 0.0, %v1422
        %v1424 = vpop.f32.mrf.mxu0
        %1425 = vmatprep.mubr.bf16.mxu0 0
        %1426 = vmatmul.mubr.bf16.gmra.mxu0 %v1343
        %v1427 = vpop.f32.mrf.mxu0
        %v1428 = vadd.f32 0.0, %v1427
        %v1429 = vpop.f32.mrf.mxu0
        %v1430 = vpop.f32.mrf.mxu0
        %v1431 = vadd.f32 0.0, %v1430
        %v1432 = vpop.f32.mrf.mxu0
        %1433 = vmatprep.mubr.bf16.mxu0 0
        %1434 = vmatmul.mubr.bf16.gmra.mxu0 %v1344
        %v1435 = vpop.f32.mrf.mxu0
        %v1436 = vadd.f32 0.0, %v1435
        %v1437 = vpop.f32.mrf.mxu0
        %v1438 = vpop.f32.mrf.mxu0
        %v1439 = vadd.f32 0.0, %v1438
        %v1440 = vpop.f32.mrf.mxu0
        %1441 = vdwg.mxu0
        %v1442 = vrcp.pop %v1306
        %v1443 = vrcp.pop %v1308
        %v1444 = vrcp.pop %v1310
        %v1445 = vrcp.pop %v1312
        %v1446 = vrcp.pop %v1314
        %v1447 = vrcp.pop %v1316
        %v1448 = vrcp.pop %v1318
        %v1449 = vrcp.pop %v1320
        %v1450 = vrcp.pop %v1322
        %v1451 = vrcp.pop %v1324
        %v1452 = vrcp.pop %v1326
        %v1453 = vrcp.pop %v1328
        %v1454 = vrcp.pop %v1330
        %v1455 = vrcp.pop %v1332
        %v1456 = vrcp.pop %v1334
        %v1457 = vrcp.pop %v1336
        %v1458 = vmul.f32 %v1380, %v1442
        %v1459 = vmul.f32 %v1383, %v1443
        %v1460 = vmul.f32 %v1388, %v1444
        %v1461 = vmul.f32 %v1391, %v1445
        %v1462 = vmul.f32 %v1396, %v1446
        %v1463 = vmul.f32 %v1399, %v1447
        %v1464 = vmul.f32 %v1404, %v1448
        %v1465 = vmul.f32 %v1407, %v1449
        %v1466 = vmul.f32 %v1412, %v1450
        %v1467 = vmul.f32 %v1415, %v1451
        %v1468 = vmul.f32 %v1420, %v1452
        %v1469 = vmul.f32 %v1423, %v1453
        %v1470 = vmul.f32 %v1428, %v1454
        %v1471 = vmul.f32 %v1431, %v1455
        %v1472 = vmul.f32 %v1436, %v1456
        %v1473 = vmul.f32 %v1439, %v1457
        %1474 = vst.msk [vmem:[%s167] sm:$0xff] %vm1063, %v1458
        %1475 = vst.msk [vmem:[%s167 + $0x8] sm:$0xff] %vm1063, %v1459
        %1476 = vst.msk [vmem:[%s167 + $0x10] sm:$0xff] %vm1063, %v1460
        %1477 = vst.msk [vmem:[%s167 + $0x18] sm:$0xff] %vm1063, %v1461
        %1478 = vst.msk [vmem:[%s167 + $0x20] sm:$0xff] %vm1063, %v1462
        %1479 = vst.msk [vmem:[%s167 + $0x28] sm:$0xff] %vm1063, %v1463
        %1480 = vst.msk [vmem:[%s167 + $0x30] sm:$0xff] %vm1063, %v1464
        %1481 = vst.msk [vmem:[%s167 + $0x38] sm:$0xff] %vm1063, %v1465
        %1482 = vst.msk [vmem:[%s167 + $0x40] sm:$0xff] %vm1063, %v1466
        %1483 = vst.msk [vmem:[%s167 + $0x48] sm:$0xff] %vm1063, %v1467
        %1484 = vst.msk [vmem:[%s167 + $0x50] sm:$0xff] %vm1063, %v1468
        %1485 = vst.msk [vmem:[%s167 + $0x58] sm:$0xff] %vm1063, %v1469
        %1486 = vst.msk [vmem:[%s167 + $0x60] sm:$0xff] %vm1063, %v1470
        %1487 = vst.msk [vmem:[%s167 + $0x68] sm:$0xff] %vm1063, %v1471
        %1488 = vst.msk [vmem:[%s167 + $0x70] sm:$0xff] %vm1063, %v1472
        %1489 = vst.msk [vmem:[%s167 + $0x78] sm:$0xff] %vm1063, %v1473
        %v1490 = vpack.c.bf16 %v914, %v910
        %v1491 = vpack.c.bf16 %v924, %v920
        %v1492 = vpack.c.bf16 %v934, %v930
        %v1493 = vpack.c.bf16 %v944, %v940
        %v1494 = vpack.c.bf16 %v954, %v950
        %v1495 = vpack.c.bf16 %v964, %v960
        %v1496 = vpack.c.bf16 %v974, %v970
        %v1497 = vpack.c.bf16 %v984, %v980
        %v1498 = vpack.c.bf16 %v916, %v912
        %v1499 = vpack.c.bf16 %v926, %v922
        %v1500 = vpack.c.bf16 %v936, %v932
        %v1501 = vpack.c.bf16 %v946, %v942
        %v1502 = vpack.c.bf16 %v956, %v952
        %v1503 = vpack.c.bf16 %v966, %v962
        %v1504 = vpack.c.bf16 %v976, %v972
        %v1505 = vpack.c.bf16 %v986, %v982
        %1514 = vrot.lane.b32.xlu0 %v1490, 64
        %v1515 = vpop.permute.xlu0 %1514
        %1516 = vrot.lane.b32.xlu0 %v1491, 64
        %v1517 = vpop.permute.xlu0 %1516
        %1518 = vrot.lane.b32.xlu0 %v1492, 64
        %v1519 = vpop.permute.xlu0 %1518
        %1520 = vrot.lane.b32.xlu0 %v1493, 64
        %v1521 = vpop.permute.xlu0 %1520
        %1522 = vrot.lane.b32.xlu0 %v1494, 64
        %v1523 = vpop.permute.xlu0 %1522
        %1524 = vrot.lane.b32.xlu0 %v1495, 64
        %v1525 = vpop.permute.xlu0 %1524
        %1526 = vrot.lane.b32.xlu0 %v1496, 64
        %v1527 = vpop.permute.xlu0 %1526
        %1528 = vrot.lane.b32.xlu0 %v1497, 64
        %v1529 = vpop.permute.xlu0 %1528
        %v1531 = vsel %vm1063, %v1490, 0
        %v1534 = vsel %vm1063, %v1491, 0
        %v1537 = vsel %vm1063, %v1492, 0
        %v1540 = vsel %vm1063, %v1493, 0
        %v1543 = vsel %vm1063, %v1494, 0
        %v1546 = vsel %vm1063, %v1495, 0
        %v1549 = vsel %vm1063, %v1496, 0
        %v1552 = vsel %vm1063, %v1497, 0
        %v1555 = vsel %vm1063, %v1515, 0
        %v1558 = vsel %vm1063, %v1517, 0
        %v1561 = vsel %vm1063, %v1519, 0
        %v1564 = vsel %vm1063, %v1521, 0
        %v1567 = vsel %vm1063, %v1523, 0
        %v1570 = vsel %vm1063, %v1525, 0
        %v1573 = vsel %vm1063, %v1527, 0
        %v1576 = vsel %vm1063, %v1529, 0
        %1578 = vmatprep.subr.bf16.mxu0 0
        %1579 = vmatpush1.bf16.xpose.msra.mxu0 %v1576
        %1580 = vmatprep.subr.bf16.mxu0 0
        %1581 = vmatpush1.bf16.xpose.msra.mxu0 %v1573
        %1582 = vmatprep.subr.bf16.mxu0 0
        %1583 = vmatpush1.bf16.xpose.msra.mxu0 %v1570
        %1584 = vmatprep.subr.bf16.mxu0 0
        %1585 = vmatpush1.bf16.xpose.msra.mxu0 %v1567
        %1586 = vmatprep.subr.bf16.mxu0 0
        %1587 = vmatpush1.bf16.xpose.msra.mxu0 %v1564
        %1588 = vmatprep.subr.bf16.mxu0 0
        %1589 = vmatpush1.bf16.xpose.msra.mxu0 %v1561
        %1590 = vmatprep.subr.bf16.mxu0 0
        %1591 = vmatpush1.bf16.xpose.msra.mxu0 %v1558
        %1592 = vmatprep.subr.bf16.mxu0 0
        %1593 = vmatpush1.bf16.xpose.msra.mxu0 %v1555
        %1594 = vmatprep.subr.bf16.mxu0 0
        %1595 = vmatpush2.bf16.xpose.msra.mxu0 0
        %1596 = vmatprep.subr.bf16.mxu0 0
        %1597 = vmatpush2.bf16.xpose.msra.mxu0 0
        %1598 = vmatprep.subr.bf16.mxu0 0
        %1599 = vmatpush2.bf16.xpose.msra.mxu0 0
        %1600 = vmatprep.subr.bf16.mxu0 0
        %1601 = vmatpush2.bf16.xpose.msra.mxu0 0
        %1602 = vmatprep.subr.bf16.mxu0 0
        %1603 = vmatpush2.bf16.xpose.msra.mxu0 0
        %1604 = vmatprep.subr.bf16.mxu0 0
        %1605 = vmatpush2.bf16.xpose.msra.mxu0 0
        %1606 = vmatprep.subr.bf16.mxu0 0
        %1607 = vmatpush2.bf16.xpose.msra.mxu0 0
        %1608 = vmatprep.subr.bf16.mxu0 0
        %1609 = vmatpush2.bf16.xpose.msra.mxu0 0
        %1610 = vmatprep.mubr.bf16.mxu0 0
        %1611 = vmatmul.mubr.bf16.gmra.mxu0 %v1531
        %v1612 = vpop.f32.mrf.mxu0
        %v1613 = vadd.f32 0.0, %v1612
        %v1614 = vpop.f32.mrf.mxu0
        %v1615 = vpop.f32.mrf.mxu0
        %v1616 = vadd.f32 0.0, %v1615
        %v1617 = vpop.f32.mrf.mxu0
        %1618 = vmatprep.mubr.bf16.mxu0 0
        %1619 = vmatmul.mubr.bf16.gmra.mxu0 %v1534
        %v1620 = vpop.f32.mrf.mxu0
        %v1621 = vadd.f32 0.0, %v1620
        %v1622 = vpop.f32.mrf.mxu0
        %v1623 = vpop.f32.mrf.mxu0
        %v1624 = vadd.f32 0.0, %v1623
        %v1625 = vpop.f32.mrf.mxu0
        %1626 = vmatprep.mubr.bf16.mxu0 0
        %1627 = vmatmul.mubr.bf16.gmra.mxu0 %v1537
        %v1628 = vpop.f32.mrf.mxu0
        %v1629 = vadd.f32 0.0, %v1628
        %v1630 = vpop.f32.mrf.mxu0
        %v1631 = vpop.f32.mrf.mxu0
        %v1632 = vadd.f32 0.0, %v1631
        %v1633 = vpop.f32.mrf.mxu0
        %1634 = vmatprep.mubr.bf16.mxu0 0
        %1635 = vmatmul.mubr.bf16.gmra.mxu0 %v1540
        %v1636 = vpop.f32.mrf.mxu0
        %v1637 = vadd.f32 0.0, %v1636
        %v1638 = vpop.f32.mrf.mxu0
        %v1639 = vpop.f32.mrf.mxu0
        %v1640 = vadd.f32 0.0, %v1639
        %v1641 = vpop.f32.mrf.mxu0
        %1642 = vmatprep.mubr.bf16.mxu0 0
        %1643 = vmatmul.mubr.bf16.gmra.mxu0 %v1543
        %v1644 = vpop.f32.mrf.mxu0
        %v1645 = vadd.f32 0.0, %v1644
        %v1646 = vpop.f32.mrf.mxu0
        %v1647 = vpop.f32.mrf.mxu0
        %v1648 = vadd.f32 0.0, %v1647
        %v1649 = vpop.f32.mrf.mxu0
        %1650 = vmatprep.mubr.bf16.mxu0 0
        %1651 = vmatmul.mubr.bf16.gmra.mxu0 %v1546
        %v1652 = vpop.f32.mrf.mxu0
        %v1653 = vadd.f32 0.0, %v1652
        %v1654 = vpop.f32.mrf.mxu0
        %v1655 = vpop.f32.mrf.mxu0
        %v1656 = vadd.f32 0.0, %v1655
        %v1657 = vpop.f32.mrf.mxu0
        %1658 = vmatprep.mubr.bf16.mxu0 0
        %1659 = vmatmul.mubr.bf16.gmra.mxu0 %v1549
        %v1660 = vpop.f32.mrf.mxu0
        %v1661 = vadd.f32 0.0, %v1660
        %v1662 = vpop.f32.mrf.mxu0
        %v1663 = vpop.f32.mrf.mxu0
        %v1664 = vadd.f32 0.0, %v1663
        %v1665 = vpop.f32.mrf.mxu0
        %1666 = vmatprep.mubr.bf16.mxu0 0
        %1667 = vmatmul.mubr.bf16.gmra.mxu0 %v1552
        %v1668 = vpop.f32.mrf.mxu0
        %v1669 = vadd.f32 0.0, %v1668
        %v1670 = vpop.f32.mrf.mxu0
        %v1671 = vpop.f32.mrf.mxu0
        %v1672 = vadd.f32 0.0, %v1671
        %v1673 = vpop.f32.mrf.mxu0
        %1674 = vdwg.mxu0
        %v1675 = vsel %vm1007, %v1613, -1e+30
        %v1676 = vsel %vm1008, %v1616, -1e+30
        %v1677 = vsel %vm1009, %v1621, -1e+30
        %v1678 = vsel %vm1010, %v1624, -1e+30
        %v1679 = vsel %vm1011, %v1629, -1e+30
        %v1680 = vsel %vm1012, %v1632, -1e+30
        %v1681 = vsel %vm1013, %v1637, -1e+30
        %v1682 = vsel %vm1014, %v1640, -1e+30
        %v1683 = vsel %vm1015, %v1645, -1e+30
        %v1684 = vsel %vm1016, %v1648, -1e+30
        %v1685 = vsel %vm1017, %v1653, -1e+30
        %v1686 = vsel %vm1018, %v1656, -1e+30
        %v1687 = vsel %vm1019, %v1661, -1e+30
        %v1688 = vsel %vm1020, %v1664, -1e+30
        %v1689 = vsel %vm1021, %v1669, -1e+30
        %v1690 = vsel %vm1022, %v1672, -1e+30
        %1691 = vmax.xlane.f32.xlu0 %v1675
        %v1692 = vpop.xlane.xlu0 %1691
        %1693 = vmax.xlane.f32.xlu0 %v1676
        %v1694 = vpop.xlane.xlu0 %1693
        %1695 = vmax.xlane.f32.xlu0 %v1677
        %v1696 = vpop.xlane.xlu0 %1695
        %1697 = vmax.xlane.f32.xlu0 %v1678
        %v1698 = vpop.xlane.xlu0 %1697
        %1699 = vmax.xlane.f32.xlu0 %v1679
        %v1700 = vpop.xlane.xlu0 %1699
        %1701 = vmax.xlane.f32.xlu0 %v1680
        %v1702 = vpop.xlane.xlu0 %1701
        %1703 = vmax.xlane.f32.xlu0 %v1681
        %v1704 = vpop.xlane.xlu0 %1703
        %1705 = vmax.xlane.f32.xlu0 %v1682
        %v1706 = vpop.xlane.xlu0 %1705
        %1707 = vmax.xlane.f32.xlu0 %v1683
        %v1708 = vpop.xlane.xlu0 %1707
        %1709 = vmax.xlane.f32.xlu0 %v1684
        %v1710 = vpop.xlane.xlu0 %1709
        %1711 = vmax.xlane.f32.xlu0 %v1685
        %v1712 = vpop.xlane.xlu0 %1711
        %1713 = vmax.xlane.f32.xlu0 %v1686
        %v1714 = vpop.xlane.xlu0 %1713
        %1715 = vmax.xlane.f32.xlu0 %v1687
        %v1716 = vpop.xlane.xlu0 %1715
        %1717 = vmax.xlane.f32.xlu0 %v1688
        %v1718 = vpop.xlane.xlu0 %1717
        %1719 = vmax.xlane.f32.xlu0 %v1689
        %v1720 = vpop.xlane.xlu0 %1719
        %1721 = vmax.xlane.f32.xlu0 %v1690
        %v1722 = vpop.xlane.xlu0 %1721
        %v1723 = vsub.f32 %v1675, %v1692
        %v1724 = vsub.f32 %v1676, %v1694
        %v1725 = vsub.f32 %v1677, %v1696
        %v1726 = vsub.f32 %v1678, %v1698
        %v1727 = vsub.f32 %v1679, %v1700
        %v1728 = vsub.f32 %v1680, %v1702
        %v1729 = vsub.f32 %v1681, %v1704
        %v1730 = vsub.f32 %v1682, %v1706
        %v1731 = vsub.f32 %v1683, %v1708
        %v1732 = vsub.f32 %v1684, %v1710
        %v1733 = vsub.f32 %v1685, %v1712
        %v1734 = vsub.f32 %v1686, %v1714
        %v1735 = vsub.f32 %v1687, %v1716
        %v1736 = vsub.f32 %v1688, %v1718
        %v1737 = vsub.f32 %v1689, %v1720
        %v1738 = vsub.f32 %v1690, %v1722
        %v1739 = vmul.f32 %v1723, 1.442695
        %v1740 = vpow.pop %v1739
        %v1741 = vmul.f32 %v1724, 1.442695
        %v1742 = vpow.pop %v1741
        %v1743 = vmul.f32 %v1725, 1.442695
        %v1744 = vpow.pop %v1743
        %v1745 = vmul.f32 %v1726, 1.442695
        %v1746 = vpow.pop %v1745
        %v1747 = vmul.f32 %v1727, 1.442695
        %v1748 = vpow.pop %v1747
        %v1749 = vmul.f32 %v1728, 1.442695
        %v1750 = vpow.pop %v1749
        %v1751 = vmul.f32 %v1729, 1.442695
        %v1752 = vpow.pop %v1751
        %v1753 = vmul.f32 %v1730, 1.442695
        %v1754 = vpow.pop %v1753
        %v1755 = vmul.f32 %v1731, 1.442695
        %v1756 = vpow.pop %v1755
        %v1757 = vmul.f32 %v1732, 1.442695
        %v1758 = vpow.pop %v1757
        %v1759 = vmul.f32 %v1733, 1.442695
        %v1760 = vpow.pop %v1759
        %v1761 = vmul.f32 %v1734, 1.442695
        %v1762 = vpow.pop %v1761
        %v1763 = vmul.f32 %v1735, 1.442695
        %v1764 = vpow.pop %v1763
        %v1765 = vmul.f32 %v1736, 1.442695
        %v1766 = vpow.pop %v1765
        %v1767 = vmul.f32 %v1737, 1.442695
        %v1768 = vpow.pop %v1767
        %v1769 = vmul.f32 %v1738, 1.442695
        %v1770 = vpow.pop %v1769
        %1771 = vadd.xlane.f32.xlu0 %v1740
        %v1772 = vpop.xlane.xlu0 %1771
        %1773 = vadd.xlane.f32.xlu0 %v1742
        %v1774 = vpop.xlane.xlu0 %1773
        %1775 = vadd.xlane.f32.xlu0 %v1744
        %v1776 = vpop.xlane.xlu0 %1775
        %1777 = vadd.xlane.f32.xlu0 %v1746
        %v1778 = vpop.xlane.xlu0 %1777
        %1779 = vadd.xlane.f32.xlu0 %v1748
        %v1780 = vpop.xlane.xlu0 %1779
        %1781 = vadd.xlane.f32.xlu0 %v1750
        %v1782 = vpop.xlane.xlu0 %1781
        %1783 = vadd.xlane.f32.xlu0 %v1752
        %v1784 = vpop.xlane.xlu0 %1783
        %1785 = vadd.xlane.f32.xlu0 %v1754
        %v1786 = vpop.xlane.xlu0 %1785
        %1787 = vadd.xlane.f32.xlu0 %v1756
        %v1788 = vpop.xlane.xlu0 %1787
        %1789 = vadd.xlane.f32.xlu0 %v1758
        %v1790 = vpop.xlane.xlu0 %1789
        %1791 = vadd.xlane.f32.xlu0 %v1760
        %v1792 = vpop.xlane.xlu0 %1791
        %1793 = vadd.xlane.f32.xlu0 %v1762
        %v1794 = vpop.xlane.xlu0 %1793
        %1795 = vadd.xlane.f32.xlu0 %v1764
        %v1796 = vpop.xlane.xlu0 %1795
        %1797 = vadd.xlane.f32.xlu0 %v1766
        %v1798 = vpop.xlane.xlu0 %1797
        %1799 = vadd.xlane.f32.xlu0 %v1768
        %v1800 = vpop.xlane.xlu0 %1799
        %1801 = vadd.xlane.f32.xlu0 %v1770
        %v1802 = vpop.xlane.xlu0 %1801
        %v1803 = vpack.c.bf16 %v1742, %v1740
        %v1804 = vpack.c.bf16 %v1746, %v1744
        %v1805 = vpack.c.bf16 %v1750, %v1748
        %v1806 = vpack.c.bf16 %v1754, %v1752
        %v1807 = vpack.c.bf16 %v1758, %v1756
        %v1808 = vpack.c.bf16 %v1762, %v1760
        %v1809 = vpack.c.bf16 %v1766, %v1764
        %v1810 = vpack.c.bf16 %v1770, %v1768
        %1811 = vmatprep.subr.bf16.mxu0 0
        %1812 = vmatpush1.bf16.msra.mxu0 %v1505
        %1813 = vmatprep.subr.bf16.mxu0 0
        %1814 = vmatpush1.bf16.msra.mxu0 %v1504
        %1815 = vmatprep.subr.bf16.mxu0 0
        %1816 = vmatpush1.bf16.msra.mxu0 %v1503
        %1817 = vmatprep.subr.bf16.mxu0 0
        %1818 = vmatpush1.bf16.msra.mxu0 %v1502
        %1819 = vmatprep.subr.bf16.mxu0 0
        %1820 = vmatpush1.bf16.msra.mxu0 %v1501
        %1821 = vmatprep.subr.bf16.mxu0 0
        %1822 = vmatpush1.bf16.msra.mxu0 %v1500
        %1823 = vmatprep.subr.bf16.mxu0 0
        %1824 = vmatpush1.bf16.msra.mxu0 %v1499
        %1825 = vmatprep.subr.bf16.mxu0 0
        %1826 = vmatpush1.bf16.msra.mxu0 %v1498
        %1827 = vmatprep.subr.bf16.mxu0 0
        %1828 = vmatpush2.bf16.msra.mxu0 0
        %1829 = vmatprep.subr.bf16.mxu0 0
        %1830 = vmatpush2.bf16.msra.mxu0 0
        %1831 = vmatprep.subr.bf16.mxu0 0
        %1832 = vmatpush2.bf16.msra.mxu0 0
        %1833 = vmatprep.subr.bf16.mxu0 0
        %1834 = vmatpush2.bf16.msra.mxu0 0
        %1835 = vmatprep.subr.bf16.mxu0 0
        %1836 = vmatpush2.bf16.msra.mxu0 0
        %1837 = vmatprep.subr.bf16.mxu0 0
        %1838 = vmatpush2.bf16.msra.mxu0 0
        %1839 = vmatprep.subr.bf16.mxu0 0
        %1840 = vmatpush2.bf16.msra.mxu0 0
        %1841 = vmatprep.subr.bf16.mxu0 0
        %1842 = vmatpush2.bf16.msra.mxu0 0
        %1843 = vmatprep.mubr.bf16.mxu0 0
        %1844 = vmatmul.mubr.bf16.gmra.mxu0 %v1803
        %v1845 = vpop.f32.mrf.mxu0
        %v1846 = vadd.f32 0.0, %v1845
        %v1847 = vpop.f32.mrf.mxu0
        %v1848 = vpop.f32.mrf.mxu0
        %v1849 = vadd.f32 0.0, %v1848
        %v1850 = vpop.f32.mrf.mxu0
        %1851 = vmatprep.mubr.bf16.mxu0 0
        %1852 = vmatmul.mubr.bf16.gmra.mxu0 %v1804
        %v1853 = vpop.f32.mrf.mxu0
        %v1854 = vadd.f32 0.0, %v1853
        %v1855 = vpop.f32.mrf.mxu0
        %v1856 = vpop.f32.mrf.mxu0
        %v1857 = vadd.f32 0.0, %v1856
        %v1858 = vpop.f32.mrf.mxu0
        %1859 = vmatprep.mubr.bf16.mxu0 0
        %1860 = vmatmul.mubr.bf16.gmra.mxu0 %v1805
        %v1861 = vpop.f32.mrf.mxu0
        %v1862 = vadd.f32 0.0, %v1861
        %v1863 = vpop.f32.mrf.mxu0
        %v1864 = vpop.f32.mrf.mxu0
        %v1865 = vadd.f32 0.0, %v1864
        %v1866 = vpop.f32.mrf.mxu0
        %1867 = vmatprep.mubr.bf16.mxu0 0
        %1868 = vmatmul.mubr.bf16.gmra.mxu0 %v1806
        %v1869 = vpop.f32.mrf.mxu0
        %v1870 = vadd.f32 0.0, %v1869
        %v1871 = vpop.f32.mrf.mxu0
        %v1872 = vpop.f32.mrf.mxu0
        %v1873 = vadd.f32 0.0, %v1872
        %v1874 = vpop.f32.mrf.mxu0
        %1875 = vmatprep.mubr.bf16.mxu0 0
        %1876 = vmatmul.mubr.bf16.gmra.mxu0 %v1807
        %v1877 = vpop.f32.mrf.mxu0
        %v1878 = vadd.f32 0.0, %v1877
        %v1879 = vpop.f32.mrf.mxu0
        %v1880 = vpop.f32.mrf.mxu0
        %v1881 = vadd.f32 0.0, %v1880
        %v1882 = vpop.f32.mrf.mxu0
        %1883 = vmatprep.mubr.bf16.mxu0 0
        %1884 = vmatmul.mubr.bf16.gmra.mxu0 %v1808
        %v1885 = vpop.f32.mrf.mxu0
        %v1886 = vadd.f32 0.0, %v1885
        %v1887 = vpop.f32.mrf.mxu0
        %v1888 = vpop.f32.mrf.mxu0
        %v1889 = vadd.f32 0.0, %v1888
        %v1890 = vpop.f32.mrf.mxu0
        %1891 = vmatprep.mubr.bf16.mxu0 0
        %1892 = vmatmul.mubr.bf16.gmra.mxu0 %v1809
        %v1893 = vpop.f32.mrf.mxu0
        %v1894 = vadd.f32 0.0, %v1893
        %v1895 = vpop.f32.mrf.mxu0
        %v1896 = vpop.f32.mrf.mxu0
        %v1897 = vadd.f32 0.0, %v1896
        %v1898 = vpop.f32.mrf.mxu0
        %1899 = vmatprep.mubr.bf16.mxu0 0
        %1900 = vmatmul.mubr.bf16.gmra.mxu0 %v1810
        %v1901 = vpop.f32.mrf.mxu0
        %v1902 = vadd.f32 0.0, %v1901
        %v1903 = vpop.f32.mrf.mxu0
        %v1904 = vpop.f32.mrf.mxu0
        %v1905 = vadd.f32 0.0, %v1904
        %v1906 = vpop.f32.mrf.mxu0
        %1907 = vdwg.mxu0
        %v1908 = vrcp.pop %v1772
        %v1909 = vrcp.pop %v1774
        %v1910 = vrcp.pop %v1776
        %v1911 = vrcp.pop %v1778
        %v1912 = vrcp.pop %v1780
        %v1913 = vrcp.pop %v1782
        %v1914 = vrcp.pop %v1784
        %v1915 = vrcp.pop %v1786
        %v1916 = vrcp.pop %v1788
        %v1917 = vrcp.pop %v1790
        %v1918 = vrcp.pop %v1792
        %v1919 = vrcp.pop %v1794
        %v1920 = vrcp.pop %v1796
        %v1921 = vrcp.pop %v1798
        %v1922 = vrcp.pop %v1800
        %v1923 = vrcp.pop %v1802
        %v1924 = vmul.f32 %v1846, %v1908
        %v1925 = vmul.f32 %v1849, %v1909
        %v1926 = vmul.f32 %v1854, %v1910
        %v1927 = vmul.f32 %v1857, %v1911
        %v1928 = vmul.f32 %v1862, %v1912
        %v1929 = vmul.f32 %v1865, %v1913
        %v1930 = vmul.f32 %v1870, %v1914
        %v1931 = vmul.f32 %v1873, %v1915
        %v1932 = vmul.f32 %v1878, %v1916
        %v1933 = vmul.f32 %v1881, %v1917
        %v1934 = vmul.f32 %v1886, %v1918
        %v1935 = vmul.f32 %v1889, %v1919
        %v1936 = vmul.f32 %v1894, %v1920
        %v1937 = vmul.f32 %v1897, %v1921
        %v1938 = vmul.f32 %v1902, %v1922
        %v1939 = vmul.f32 %v1905, %v1923
        %s1940 = scalar_lea.vmem %s167, 128
        %1941 = vst.msk [vmem:[%s1940] sm:$0xff] %vm1063, %v1924
        %1942 = vst.msk [vmem:[%s1940 + $0x8] sm:$0xff] %vm1063, %v1925
        %1943 = vst.msk [vmem:[%s1940 + $0x10] sm:$0xff] %vm1063, %v1926
        %1944 = vst.msk [vmem:[%s1940 + $0x18] sm:$0xff] %vm1063, %v1927
        %1945 = vst.msk [vmem:[%s1940 + $0x20] sm:$0xff] %vm1063, %v1928
        %1946 = vst.msk [vmem:[%s1940 + $0x28] sm:$0xff] %vm1063, %v1929
        %1947 = vst.msk [vmem:[%s1940 + $0x30] sm:$0xff] %vm1063, %v1930
        %1948 = vst.msk [vmem:[%s1940 + $0x38] sm:$0xff] %vm1063, %v1931
        %1949 = vst.msk [vmem:[%s1940 + $0x40] sm:$0xff] %vm1063, %v1932
        %1950 = vst.msk [vmem:[%s1940 + $0x48] sm:$0xff] %vm1063, %v1933
        %1951 = vst.msk [vmem:[%s1940 + $0x50] sm:$0xff] %vm1063, %v1934
        %1952 = vst.msk [vmem:[%s1940 + $0x58] sm:$0xff] %vm1063, %v1935
        %1953 = vst.msk [vmem:[%s1940 + $0x60] sm:$0xff] %vm1063, %v1936
        %1954 = vst.msk [vmem:[%s1940 + $0x68] sm:$0xff] %vm1063, %v1937
        %1955 = vst.msk [vmem:[%s1940 + $0x70] sm:$0xff] %vm1063, %v1938
        %1956 = vst.msk [vmem:[%s1940 + $0x78] sm:$0xff] %vm1063, %v1939
        %s1957 = smul.u32 2, %s16
        %p1958 = scmp.lt.s32.totalorder %s1957, 3
        %s1959 = scalar_select %p1958, %s1957, 3
        %s1960 = smul.addr %s1959, 16
        %s1961 = smul.addr %s1960, 8
        %s1962 = scalar_lea.vmem %s2, %s1961
        // Predicated region
        $region33: #{tpu_custom_call.1} parent=27 // pred_check
          %p1963 = pneg %p81
        $region34: #{tpu_custom_call.1} parent=27 // pred_check_branch
          %1965 = sbr.rel (%p1963) target = $region36
        $region35: #{tpu_custom_call.1} parent=27 // pred_region
          %s1966 = smul.u32 2, %s16
        $region36: #{tpu_custom_call.1} parent=27 // pred_fallthru
          _
      $region28: #{tpu_custom_call.1} parent=5 // pred_fallthru
        _
      %p1967 = scmp.le.s32.totalorder 2, %s11
      // Predicated region
      $region37: #{tpu_custom_call.1} parent=5 // pred_check
        %p1968 = pneg %p1967
      $region38: #{tpu_custom_call.1} parent=5 // pred_check_branch
        %1970 = sbr.rel (%p1968) target = $region40
      $region39: #{tpu_custom_call.1} parent=5 // pred_region
        %s1971 = ssub.s32 %s11, 2
        // Predicated region
        $region41: #{tpu_custom_call.1} parent=39 // pred_check
          %p1972 = pneg %p87
        $region42: #{tpu_custom_call.1} parent=39 // pred_check_branch
          %1974 = sbr.rel (%p1972) target = $region44
        $region43: #{tpu_custom_call.1} parent=39 // pred_region
          %s1975 = smul.u32 2, %s17
          %p1976 = scmp.lt.s32.totalorder %s1975, 3
          %s1977 = scalar_select %p1976, %s1975, 3
          %s1978 = smul.addr %s1977, 16
          %s1979 = smul.addr %s1978, 8
          %s1980 = scalar_lea.vmem %s2, %s1979
        $region44: #{tpu_custom_call.1} parent=39 // pred_fallthru
          _
      $region40: #{tpu_custom_call.1} parent=5 // pred_fallthru
        _
    $region6: #{tpu_custom_call.1} parent=1 // loop_footer
      %s15 = sadd.s32 1, %s11
    $region7: #{tpu_custom_call.1} parent=1 // loop_footer_branch
      %10 = sbr.rel target = $region3
    $region8: #{tpu_custom_call.1} parent=1 // loop_exit
      _
    %1981 = vsyncpa [#allocation3], 1
    %s1982 = scalar_lea.sflag [#allocation3], 1
    %1983 = vsyncpa %s1982, 1

</llo_original>
